<compile_context>
chip_gen: v5e
topology: v5e:2x2
jax: 0.10.0
libtpu: 0.0.40
codegen_flags: <defaults>
</compile_context>

<pallas_src>
import jax
import jax.numpy as jnp
import numpy as np
from jax import lax
from jax.experimental import pallas as pl
from jax.experimental.pallas import tpu as pltpu

C_HID = 512     # hidden channels of Conv1d(1, 512, 3, 1, 1)
L = 10          # sequence length (fixed by nn.Linear(10, 2))
N_PASSES = 5    # number of residual passUpDown applications


def model_kernel(x_ref, aux_ref, c1_ref, w2_ref, seg_ref, tail_ref, out_ref):
    f32 = jnp.float32
    blp = x_ref.shape[0]                      # padded (batch*L) rows

    # ---- Loop-invariant operands, hoisted once. ----
    aux = aux_ref[...]                        # (BLp, 4)
    mask_m = aux[:, 0:1]                      # 1 where a left  neighbour exists
    mask_p = aux[:, 1:2]                      # 1 where a right neighbour exists
    w_exp = aux[:, 2:4]                       # (BLp, 2) row-expanded Linear weights

    c1 = c1_ref[...]                          # (4, 512): conv1 taps + bias
    w1_0 = c1[0:1, :]                         # tap k=0  (multiplies x[i-1])
    w1_1 = c1[1:2, :]                         # tap k=1  (multiplies x[i])
    w1_2 = c1[2:3, :]                         # tap k=2  (multiplies x[i+1])
    b1 = c1[3:4, :]

    w2 = w2_ref[...]                          # (512, 3) bf16 conv2 weights

    tail = tail_ref[...]                      # (1, 3): [conv2 bias, lin bias 0, lin bias 1]
    b2 = tail[:, 0:1]
    lb = tail[:, 1:3]

    lane3 = lax.broadcasted_iota(jnp.int32, (1, 3), 1)
    oh0 = (lane3 == 0).astype(f32)            # (1, 3) one-hot lane masks
    oh1 = (lane3 == 1).astype(f32)
    oh2 = (lane3 == 2).astype(f32)

    x = x_ref[...]                            # (BLp, 1) flattened batch column

    for _ in range(N_PASSES):
        # Neighbour columns via sublane rolls (XLU) + boundary masks (VPU).
        x_m1 = pltpu.roll(x, shift=1, axis=0) * mask_m        # x[i-1], 0 at batch start
        x_p1 = pltpu.roll(x, shift=blp - 1, axis=0) * mask_p  # x[i+1], 0 at batch end

        # --- Conv1d(1, 512, 3, pad=1) + ReLU as VPU broadcast MACs (no MXU).
        h = jnp.maximum(x_m1 * w1_0 + x * w1_1 + x_p1 * w1_2 + b1, 0.0)  # (BLp, 512)

        # --- Conv1d(512, 1, 3, pad=1): one bf16 MXU matmul, f32 accumulate.
        v = jnp.dot(h.astype(jnp.bfloat16), w2,
                    preferred_element_type=f32)                # (BLp, 3)
        v_m1 = pltpu.roll(v, shift=1, axis=0) * mask_m         # v[i-1, :]
        v_p1 = pltpu.roll(v, shift=blp - 1, axis=0) * mask_p   # v[i+1, :]
        y = jnp.sum(v_m1 * oh0 + v * oh1 + v_p1 * oh2,
                    axis=1, keepdims=True) + b2                # (BLp, 1)

        x = x + jnp.maximum(y, 0.0)                            # residual add (f32)

    # --- flatten -> Linear(10, 2) -> softmax(dim=1), all batches at once.
    logits = jnp.dot(seg_ref[...], x * w_exp,
                     preferred_element_type=f32) + lb          # (B, 2)
    mx = jnp.max(logits, axis=1, keepdims=True)
    e = jnp.exp(logits - mx)
    denom = jnp.sum(e, axis=1, keepdims=True)
    out_ref[...] = e * pl.reciprocal(denom, approx=True)


def _build_constants(params, batch):
    """Host-side constants, built once per (params, batch)."""
    w1f, b1, w2f, b2, l1_w, l1_b = params
    bl = batch * L
    blp = ((bl + 7) // 8) * 8                     # pad rows to a sublane multiple

    idx = np.arange(blp)
    real = idx < bl
    mask_m = ((idx % L != 0) & real).astype(np.float32)       # left neighbour exists
    mask_p = ((idx % L != L - 1) & real).astype(np.float32)   # right neighbour exists

    l1_w_np = np.asarray(l1_w, np.float32)        # (2, L)
    w_exp = np.zeros((blp, 2), np.float32)        # row b*L+t holds l1_w[:, t]
    w_exp[:bl, 0] = np.tile(l1_w_np[0], batch)
    w_exp[:bl, 1] = np.tile(l1_w_np[1], batch)
    aux = np.concatenate([mask_m[:, None], mask_p[:, None], w_exp], axis=1)  # (BLp, 4)

    seg = np.zeros((batch, blp), np.float32)      # (B, BLp) 0/1 batch selector
    seg[np.repeat(np.arange(batch), L), np.arange(bl)] = 1.0

    w1_np = np.asarray(w1f, np.float32)           # (512, 1, 3)
    b1_np = np.asarray(b1, np.float32)            # (512,)
    c1 = np.concatenate([w1_np[:, 0, :].T, b1_np[None, :]], axis=0)  # (4, 512)

    w2 = jnp.asarray(np.asarray(w2f, np.float32)[0]).astype(jnp.bfloat16)  # (512, 3)

    tail = np.array([[float(np.asarray(b2).reshape(-1)[0]),
                      float(np.asarray(l1_b)[0]),
                      float(np.asarray(l1_b)[1])]], np.float32)            # (1, 3)

    consts = (jnp.asarray(aux), jnp.asarray(c1), w2,
              jnp.asarray(seg), jnp.asarray(tail))
    return consts, blp


def make_forward_fn(params, batch):
    """Precompute constants once and return a jitted forward(x_ncl) -> (B, 2)."""
    (aux, c1, w2, seg, tail), blp = _build_constants(params, batch)
    bl = batch * L

    def full(shape):
        return pl.BlockSpec(shape, lambda i: (0,) * len(shape))

    call = pl.pallas_call(
        model_kernel,
        out_shape=jax.ShapeDtypeStruct((batch, 2), jnp.float32),
        grid=(1,),              # single step: tiny, latency-bound workload
        in_specs=[
            full((blp, 1)),         # x column
            full((blp, 4)),         # [mask_m, mask_p, w_exp0, w_exp1]
            full((4, C_HID)),       # conv1 taps + bias
            full((C_HID, 3)),       # conv2 weights (bf16)
            full((batch, blp)),     # batch selector for the head
            full((1, 3)),           # [conv2 bias, linear bias]
        ],
        out_specs=full((batch, 2)),
        compiler_params=pltpu.CompilerParams(
            dimension_semantics=("arbitrary",)),
    )

    @jax.jit
    def forward(x_ncl):
        xcol = x_ncl.reshape(bl, 1).astype(jnp.float32)
        xcol = jnp.pad(xcol, ((0, blp - bl), (0, 0)))
        return call(xcol, aux, c1, w2, seg, tail)

    return forward


def reference_forward(x_ncl, params):
    """Pure-JAX f32 reference using lax.conv (independent of the kernel math)."""
    w1f, b1, w2f, b2, l1_w, l1_b = params

    def conv1d(x, w, b):
        y = lax.conv_general_dilated(
            x, w, window_strides=(1,), padding=[(1, 1)],
            dimension_numbers=("NCH", "OIH", "NCH"))
        return y + b[None, :, None]

    def pass_up_down(x):
        h = jnp.maximum(conv1d(x, w1f, b1), 0.0)
        return jnp.maximum(conv1d(h, w2f, b2), 0.0)

    xx = x_ncl
    for _ in range(N_PASSES):
        xx = xx + pass_up_down(xx)
    flat = xx.reshape(xx.shape[0], -1)               # torch.flatten(x, 1)
    logits = flat @ l1_w.T + l1_b
    return jax.nn.softmax(logits, axis=1)            # F.softmax -> dim=1 for 2D


if __name__ == "__main__":
    key = jax.random.PRNGKey(0)
    ks = jax.random.split(key, 7)
    B = 2

    x = jax.random.normal(ks[0], (B, 1, L), dtype=jnp.float32)

    def uinit(k, shape, fan_in):
        bound = 1.0 / float(np.sqrt(fan_in))
        return jax.random.uniform(k, shape, jnp.float32, -bound, bound)

    # Deterministic, torch-shaped parameters (kaiming-uniform-like ranges).
    w1f = uinit(ks[1], (C_HID, 1, 3), 1 * 3)        # Conv1d(1, 512, 3).weight
    b1 = uinit(ks[2], (C_HID,), 1 * 3)              # Conv1d(1, 512, 3).bias
    w2f = uinit(ks[3], (1, C_HID, 3), C_HID * 3)    # Conv1d(512, 1, 3).weight
    b2 = uinit(ks[4], (1,), C_HID * 3)              # Conv1d(512, 1, 3).bias
    l1_w = uinit(ks[5], (2, L), L)                  # Linear(10, 2).weight
    l1_b = uinit(ks[6], (2,), L)                    # Linear(10, 2).bias

    params = (w1f, b1, w2f, b2, l1_w, l1_b)

    fwd = make_forward_fn(params, B)
    out = jax.block_until_ready(fwd(x))

    ref = reference_forward(x, params)
    assert out.shape == (B, 2)
    assert np.allclose(np.asarray(out).sum(axis=1), 1.0, atol=1e-2)
    assert np.allclose(np.asarray(out), np.asarray(ref), atol=5e-3, rtol=2e-2), (
        np.asarray(out), np.asarray(ref))

    print("KERNEL_OK")
</pallas_src>

<mosaic_0001>
module attributes {stable_mosaic.version = 11 : i64} {
  func.func @model_kernel(%arg0: i32, %arg1: memref<24x1xf32, #tpu.memory_space<vmem>>, %arg2: memref<24x4xf32, #tpu.memory_space<vmem>>, %arg3: memref<4x512xf32, #tpu.memory_space<vmem>>, %arg4: memref<512x3xbf16, #tpu.memory_space<vmem>>, %arg5: memref<2x24xf32, #tpu.memory_space<vmem>>, %arg6: memref<1x3xf32, #tpu.memory_space<vmem>>, %arg7: memref<2x2xf32, #tpu.memory_space<vmem>>) attributes {dimension_semantics = [#tpu.dimension_semantics<arbitrary>], iteration_bounds = array<i64: 1>, scalar_prefetch = 0 : i64, scratch_operands = 0 : i64, tpu.core_type = #tpu.core_type<tc>, window_params = [{pipeline_mode = #tpu.pipeline_mode<synchronous>, transform_indices = @transform_0, window_bounds = array<i64: 24, 1>}, {pipeline_mode = #tpu.pipeline_mode<synchronous>, transform_indices = @transform_1, window_bounds = array<i64: 24, 4>}, {pipeline_mode = #tpu.pipeline_mode<synchronous>, transform_indices = @transform_2, window_bounds = array<i64: 4, 512>}, {pipeline_mode = #tpu.pipeline_mode<synchronous>, transform_indices = @transform_3, window_bounds = array<i64: 512, 3>}, {pipeline_mode = #tpu.pipeline_mode<synchronous>, transform_indices = @transform_4, window_bounds = array<i64: 2, 24>}, {pipeline_mode = #tpu.pipeline_mode<synchronous>, transform_indices = @transform_5, window_bounds = array<i64: 1, 3>}, {pipeline_mode = #tpu.pipeline_mode<synchronous>, transform_indices = @transform_6, window_bounds = array<i64: 2, 2>}]} {
    %c0 = arith.constant 0 : index
    %c0_0 = arith.constant 0 : index
    %0 = vector.load %arg2[%c0, %c0_0] : memref<24x4xf32, #tpu.memory_space<vmem>>, vector<24x4xf32>
    %1 = vector.extract_strided_slice %0 {offsets = [0, 0], sizes = [24, 1], strides = [1, 1]} : vector<24x4xf32> to vector<24x1xf32>
    %2 = vector.extract_strided_slice %0 {offsets = [0, 1], sizes = [24, 1], strides = [1, 1]} : vector<24x4xf32> to vector<24x1xf32>
    %3 = vector.extract_strided_slice %0 {offsets = [0, 2], sizes = [24, 2], strides = [1, 1]} : vector<24x4xf32> to vector<24x2xf32>
    %c0_1 = arith.constant 0 : index
    %c0_2 = arith.constant 0 : index
    %4 = vector.load %arg3[%c0_1, %c0_2] : memref<4x512xf32, #tpu.memory_space<vmem>>, vector<4x512xf32>
    %5 = vector.extract_strided_slice %4 {offsets = [0, 0], sizes = [1, 512], strides = [1, 1]} : vector<4x512xf32> to vector<1x512xf32>
    %6 = vector.extract_strided_slice %4 {offsets = [1, 0], sizes = [1, 512], strides = [1, 1]} : vector<4x512xf32> to vector<1x512xf32>
    %7 = vector.extract_strided_slice %4 {offsets = [2, 0], sizes = [1, 512], strides = [1, 1]} : vector<4x512xf32> to vector<1x512xf32>
    %8 = vector.extract_strided_slice %4 {offsets = [3, 0], sizes = [1, 512], strides = [1, 1]} : vector<4x512xf32> to vector<1x512xf32>
    %c0_3 = arith.constant 0 : index
    %c0_4 = arith.constant 0 : index
    %9 = vector.load %arg4[%c0_3, %c0_4] : memref<512x3xbf16, #tpu.memory_space<vmem>>, vector<512x3xbf16>
    %c0_5 = arith.constant 0 : index
    %c0_6 = arith.constant 0 : index
    %10 = vector.load %arg6[%c0_5, %c0_6] : memref<1x3xf32, #tpu.memory_space<vmem>>, vector<1x3xf32>
    %11 = vector.extract_strided_slice %10 {offsets = [0, 0], sizes = [1, 1], strides = [1, 1]} : vector<1x3xf32> to vector<1x1xf32>
    %12 = vector.extract_strided_slice %10 {offsets = [0, 1], sizes = [1, 2], strides = [1, 1]} : vector<1x3xf32> to vector<1x2xf32>
    %13 = tpu.iota {dimensions = array<i32: 1>} : vector<1x3xi32>
    %c0_i32 = arith.constant 0 : i32
    %14 = vector.broadcast %c0_i32 : i32 to vector<1x3xi32>
    %15 = arith.cmpi eq, %13, %14 : vector<1x3xi32>
    %16 = arith.extui %15 : vector<1x3xi1> to vector<1x3xi32>
    %17 = arith.sitofp %16 : vector<1x3xi32> to vector<1x3xf32>
    %c1_i32 = arith.constant 1 : i32
    %18 = vector.broadcast %c1_i32 : i32 to vector<1x3xi32>
    %19 = arith.cmpi eq, %13, %18 : vector<1x3xi32>
    %20 = arith.extui %19 : vector<1x3xi1> to vector<1x3xi32>
    %21 = arith.sitofp %20 : vector<1x3xi32> to vector<1x3xf32>
    %c2_i32 = arith.constant 2 : i32
    %22 = vector.broadcast %c2_i32 : i32 to vector<1x3xi32>
    %23 = arith.cmpi eq, %13, %22 : vector<1x3xi32>
    %24 = arith.extui %23 : vector<1x3xi1> to vector<1x3xi32>
    %25 = arith.sitofp %24 : vector<1x3xi32> to vector<1x3xf32>
    %c0_7 = arith.constant 0 : index
    %c0_8 = arith.constant 0 : index
    %26 = vector.load %arg1[%c0_7, %c0_8] : memref<24x1xf32, #tpu.memory_space<vmem>>, vector<24x1xf32>
    %c1_i32_9 = arith.constant 1 : i32
    %27 = tpu.dynamic_rotate %26 by %c1_i32_9 dim 0 : vector<24x1xf32>, i32 -> vector<24x1xf32>
    %28 = arith.mulf %27, %1 : vector<24x1xf32>
    %c23_i32 = arith.constant 23 : i32
    %29 = tpu.dynamic_rotate %26 by %c23_i32 dim 0 : vector<24x1xf32>, i32 -> vector<24x1xf32>
    %30 = arith.mulf %29, %2 : vector<24x1xf32>
    %31 = vector.broadcast %28 : vector<24x1xf32> to vector<24x512xf32>
    %32 = vector.broadcast %5 : vector<1x512xf32> to vector<24x512xf32>
    %33 = arith.mulf %31, %32 : vector<24x512xf32>
    %34 = vector.broadcast %26 : vector<24x1xf32> to vector<24x512xf32>
    %35 = vector.broadcast %6 : vector<1x512xf32> to vector<24x512xf32>
    %36 = arith.mulf %34, %35 : vector<24x512xf32>
    %37 = arith.addf %33, %36 : vector<24x512xf32>
    %38 = vector.broadcast %30 : vector<24x1xf32> to vector<24x512xf32>
    %39 = vector.broadcast %7 : vector<1x512xf32> to vector<24x512xf32>
    %40 = arith.mulf %38, %39 : vector<24x512xf32>
    %41 = arith.addf %37, %40 : vector<24x512xf32>
    %42 = vector.broadcast %8 : vector<1x512xf32> to vector<24x512xf32>
    %43 = arith.addf %41, %42 : vector<24x512xf32>
    %cst = arith.constant 0.000000e+00 : f32
    %44 = vector.broadcast %cst : f32 to vector<24x512xf32>
    %45 = arith.maximumf %43, %44 : vector<24x512xf32>
    %46 = arith.truncf %45 : vector<24x512xf32> to vector<24x512xbf16>
    %cst_10 = arith.constant dense<0.000000e+00> : vector<24x3xf32>
    %47 = tpu.matmul %46, %9, %cst_10 {dimension_numbers = #tpu.dot_dimension_numbers<[1], [0], [0], [1], [0, 0, 1, 1], [], []>} : vector<24x512xbf16>, vector<512x3xbf16>, vector<24x3xf32> -> vector<24x3xf32>
    %c1_i32_11 = arith.constant 1 : i32
    %48 = tpu.dynamic_rotate %47 by %c1_i32_11 dim 0 : vector<24x3xf32>, i32 -> vector<24x3xf32>
    %49 = vector.broadcast %1 : vector<24x1xf32> to vector<24x3xf32>
    %50 = arith.mulf %48, %49 : vector<24x3xf32>
    %c23_i32_12 = arith.constant 23 : i32
    %51 = tpu.dynamic_rotate %47 by %c23_i32_12 dim 0 : vector<24x3xf32>, i32 -> vector<24x3xf32>
    %52 = vector.broadcast %2 : vector<24x1xf32> to vector<24x3xf32>
    %53 = arith.mulf %51, %52 : vector<24x3xf32>
    %54 = vector.broadcast %17 : vector<1x3xf32> to vector<24x3xf32>
    %55 = arith.mulf %50, %54 : vector<24x3xf32>
    %56 = vector.broadcast %21 : vector<1x3xf32> to vector<24x3xf32>
    %57 = arith.mulf %47, %56 : vector<24x3xf32>
    %58 = arith.addf %55, %57 : vector<24x3xf32>
    %59 = vector.broadcast %25 : vector<1x3xf32> to vector<24x3xf32>
    %60 = arith.mulf %53, %59 : vector<24x3xf32>
    %61 = arith.addf %58, %60 : vector<24x3xf32>
    %cst_13 = arith.constant dense<0.000000e+00> : vector<24xf32>
    %62 = vector.multi_reduction <add>, %61, %cst_13 [1] : vector<24x3xf32> to vector<24xf32>
    %63 = vector.shape_cast %62 : vector<24xf32> to vector<24x1xf32>
    %64 = vector.broadcast %11 : vector<1x1xf32> to vector<24x1xf32>
    %65 = arith.addf %63, %64 : vector<24x1xf32>
    %cst_14 = arith.constant 0.000000e+00 : f32
    %66 = vector.broadcast %cst_14 : f32 to vector<24x1xf32>
    %67 = arith.maximumf %65, %66 : vector<24x1xf32>
    %68 = arith.addf %26, %67 : vector<24x1xf32>
    %c1_i32_15 = arith.constant 1 : i32
    %69 = tpu.dynamic_rotate %68 by %c1_i32_15 dim 0 : vector<24x1xf32>, i32 -> vector<24x1xf32>
    %70 = arith.mulf %69, %1 : vector<24x1xf32>
    %c23_i32_16 = arith.constant 23 : i32
    %71 = tpu.dynamic_rotate %68 by %c23_i32_16 dim 0 : vector<24x1xf32>, i32 -> vector<24x1xf32>
    %72 = arith.mulf %71, %2 : vector<24x1xf32>
    %73 = vector.broadcast %70 : vector<24x1xf32> to vector<24x512xf32>
    %74 = vector.broadcast %5 : vector<1x512xf32> to vector<24x512xf32>
    %75 = arith.mulf %73, %74 : vector<24x512xf32>
    %76 = vector.broadcast %68 : vector<24x1xf32> to vector<24x512xf32>
    %77 = vector.broadcast %6 : vector<1x512xf32> to vector<24x512xf32>
    %78 = arith.mulf %76, %77 : vector<24x512xf32>
    %79 = arith.addf %75, %78 : vector<24x512xf32>
    %80 = vector.broadcast %72 : vector<24x1xf32> to vector<24x512xf32>
    %81 = vector.broadcast %7 : vector<1x512xf32> to vector<24x512xf32>
    %82 = arith.mulf %80, %81 : vector<24x512xf32>
    %83 = arith.addf %79, %82 : vector<24x512xf32>
    %84 = vector.broadcast %8 : vector<1x512xf32> to vector<24x512xf32>
    %85 = arith.addf %83, %84 : vector<24x512xf32>
    %cst_17 = arith.constant 0.000000e+00 : f32
    %86 = vector.broadcast %cst_17 : f32 to vector<24x512xf32>
    %87 = arith.maximumf %85, %86 : vector<24x512xf32>
    %88 = arith.truncf %87 : vector<24x512xf32> to vector<24x512xbf16>
    %cst_18 = arith.constant dense<0.000000e+00> : vector<24x3xf32>
    %89 = tpu.matmul %88, %9, %cst_18 {dimension_numbers = #tpu.dot_dimension_numbers<[1], [0], [0], [1], [0, 0, 1, 1], [], []>} : vector<24x512xbf16>, vector<512x3xbf16>, vector<24x3xf32> -> vector<24x3xf32>
    %c1_i32_19 = arith.constant 1 : i32
    %90 = tpu.dynamic_rotate %89 by %c1_i32_19 dim 0 : vector<24x3xf32>, i32 -> vector<24x3xf32>
    %91 = vector.broadcast %1 : vector<24x1xf32> to vector<24x3xf32>
    %92 = arith.mulf %90, %91 : vector<24x3xf32>
    %c23_i32_20 = arith.constant 23 : i32
    %93 = tpu.dynamic_rotate %89 by %c23_i32_20 dim 0 : vector<24x3xf32>, i32 -> vector<24x3xf32>
    %94 = vector.broadcast %2 : vector<24x1xf32> to vector<24x3xf32>
    %95 = arith.mulf %93, %94 : vector<24x3xf32>
    %96 = vector.broadcast %17 : vector<1x3xf32> to vector<24x3xf32>
    %97 = arith.mulf %92, %96 : vector<24x3xf32>
    %98 = vector.broadcast %21 : vector<1x3xf32> to vector<24x3xf32>
    %99 = arith.mulf %89, %98 : vector<24x3xf32>
    %100 = arith.addf %97, %99 : vector<24x3xf32>
    %101 = vector.broadcast %25 : vector<1x3xf32> to vector<24x3xf32>
    %102 = arith.mulf %95, %101 : vector<24x3xf32>
    %103 = arith.addf %100, %102 : vector<24x3xf32>
    %cst_21 = arith.constant dense<0.000000e+00> : vector<24xf32>
    %104 = vector.multi_reduction <add>, %103, %cst_21 [1] : vector<24x3xf32> to vector<24xf32>
    %105 = vector.shape_cast %104 : vector<24xf32> to vector<24x1xf32>
    %106 = vector.broadcast %11 : vector<1x1xf32> to vector<24x1xf32>
    %107 = arith.addf %105, %106 : vector<24x1xf32>
    %cst_22 = arith.constant 0.000000e+00 : f32
    %108 = vector.broadcast %cst_22 : f32 to vector<24x1xf32>
    %109 = arith.maximumf %107, %108 : vector<24x1xf32>
    %110 = arith.addf %68, %109 : vector<24x1xf32>
    %c1_i32_23 = arith.constant 1 : i32
    %111 = tpu.dynamic_rotate %110 by %c1_i32_23 dim 0 : vector<24x1xf32>, i32 -> vector<24x1xf32>
    %112 = arith.mulf %111, %1 : vector<24x1xf32>
    %c23_i32_24 = arith.constant 23 : i32
    %113 = tpu.dynamic_rotate %110 by %c23_i32_24 dim 0 : vector<24x1xf32>, i32 -> vector<24x1xf32>
    %114 = arith.mulf %113, %2 : vector<24x1xf32>
    %115 = vector.broadcast %112 : vector<24x1xf32> to vector<24x512xf32>
    %116 = vector.broadcast %5 : vector<1x512xf32> to vector<24x512xf32>
    %117 = arith.mulf %115, %116 : vector<24x512xf32>
    %118 = vector.broadcast %110 : vector<24x1xf32> to vector<24x512xf32>
    %119 = vector.broadcast %6 : vector<1x512xf32> to vector<24x512xf32>
    %120 = arith.mulf %118, %119 : vector<24x512xf32>
    %121 = arith.addf %117, %120 : vector<24x512xf32>
    %122 = vector.broadcast %114 : vector<24x1xf32> to vector<24x512xf32>
    %123 = vector.broadcast %7 : vector<1x512xf32> to vector<24x512xf32>
    %124 = arith.mulf %122, %123 : vector<24x512xf32>
    %125 = arith.addf %121, %124 : vector<24x512xf32>
    %126 = vector.broadcast %8 : vector<1x512xf32> to vector<24x512xf32>
    %127 = arith.addf %125, %126 : vector<24x512xf32>
    %cst_25 = arith.constant 0.000000e+00 : f32
    %128 = vector.broadcast %cst_25 : f32 to vector<24x512xf32>
    %129 = arith.maximumf %127, %128 : vector<24x512xf32>
    %130 = arith.truncf %129 : vector<24x512xf32> to vector<24x512xbf16>
    %cst_26 = arith.constant dense<0.000000e+00> : vector<24x3xf32>
    %131 = tpu.matmul %130, %9, %cst_26 {dimension_numbers = #tpu.dot_dimension_numbers<[1], [0], [0], [1], [0, 0, 1, 1], [], []>} : vector<24x512xbf16>, vector<512x3xbf16>, vector<24x3xf32> -> vector<24x3xf32>
    %c1_i32_27 = arith.constant 1 : i32
    %132 = tpu.dynamic_rotate %131 by %c1_i32_27 dim 0 : vector<24x3xf32>, i32 -> vector<24x3xf32>
    %133 = vector.broadcast %1 : vector<24x1xf32> to vector<24x3xf32>
    %134 = arith.mulf %132, %133 : vector<24x3xf32>
    %c23_i32_28 = arith.constant 23 : i32
    %135 = tpu.dynamic_rotate %131 by %c23_i32_28 dim 0 : vector<24x3xf32>, i32 -> vector<24x3xf32>
    %136 = vector.broadcast %2 : vector<24x1xf32> to vector<24x3xf32>
    %137 = arith.mulf %135, %136 : vector<24x3xf32>
    %138 = vector.broadcast %17 : vector<1x3xf32> to vector<24x3xf32>
    %139 = arith.mulf %134, %138 : vector<24x3xf32>
    %140 = vector.broadcast %21 : vector<1x3xf32> to vector<24x3xf32>
    %141 = arith.mulf %131, %140 : vector<24x3xf32>
    %142 = arith.addf %139, %141 : vector<24x3xf32>
    %143 = vector.broadcast %25 : vector<1x3xf32> to vector<24x3xf32>
    %144 = arith.mulf %137, %143 : vector<24x3xf32>
    %145 = arith.addf %142, %144 : vector<24x3xf32>
    %cst_29 = arith.constant dense<0.000000e+00> : vector<24xf32>
    %146 = vector.multi_reduction <add>, %145, %cst_29 [1] : vector<24x3xf32> to vector<24xf32>
    %147 = vector.shape_cast %146 : vector<24xf32> to vector<24x1xf32>
    %148 = vector.broadcast %11 : vector<1x1xf32> to vector<24x1xf32>
    %149 = arith.addf %147, %148 : vector<24x1xf32>
    %cst_30 = arith.constant 0.000000e+00 : f32
    %150 = vector.broadcast %cst_30 : f32 to vector<24x1xf32>
    %151 = arith.maximumf %149, %150 : vector<24x1xf32>
    %152 = arith.addf %110, %151 : vector<24x1xf32>
    %c1_i32_31 = arith.constant 1 : i32
    %153 = tpu.dynamic_rotate %152 by %c1_i32_31 dim 0 : vector<24x1xf32>, i32 -> vector<24x1xf32>
    %154 = arith.mulf %153, %1 : vector<24x1xf32>
    %c23_i32_32 = arith.constant 23 : i32
    %155 = tpu.dynamic_rotate %152 by %c23_i32_32 dim 0 : vector<24x1xf32>, i32 -> vector<24x1xf32>
    %156 = arith.mulf %155, %2 : vector<24x1xf32>
    %157 = vector.broadcast %154 : vector<24x1xf32> to vector<24x512xf32>
    %158 = vector.broadcast %5 : vector<1x512xf32> to vector<24x512xf32>
    %159 = arith.mulf %157, %158 : vector<24x512xf32>
    %160 = vector.broadcast %152 : vector<24x1xf32> to vector<24x512xf32>
    %161 = vector.broadcast %6 : vector<1x512xf32> to vector<24x512xf32>
    %162 = arith.mulf %160, %161 : vector<24x512xf32>
    %163 = arith.addf %159, %162 : vector<24x512xf32>
    %164 = vector.broadcast %156 : vector<24x1xf32> to vector<24x512xf32>
    %165 = vector.broadcast %7 : vector<1x512xf32> to vector<24x512xf32>
    %166 = arith.mulf %164, %165 : vector<24x512xf32>
    %167 = arith.addf %163, %166 : vector<24x512xf32>
    %168 = vector.broadcast %8 : vector<1x512xf32> to vector<24x512xf32>
    %169 = arith.addf %167, %168 : vector<24x512xf32>
    %cst_33 = arith.constant 0.000000e+00 : f32
    %170 = vector.broadcast %cst_33 : f32 to vector<24x512xf32>
    %171 = arith.maximumf %169, %170 : vector<24x512xf32>
    %172 = arith.truncf %171 : vector<24x512xf32> to vector<24x512xbf16>
    %cst_34 = arith.constant dense<0.000000e+00> : vector<24x3xf32>
    %173 = tpu.matmul %172, %9, %cst_34 {dimension_numbers = #tpu.dot_dimension_numbers<[1], [0], [0], [1], [0, 0, 1, 1], [], []>} : vector<24x512xbf16>, vector<512x3xbf16>, vector<24x3xf32> -> vector<24x3xf32>
    %c1_i32_35 = arith.constant 1 : i32
    %174 = tpu.dynamic_rotate %173 by %c1_i32_35 dim 0 : vector<24x3xf32>, i32 -> vector<24x3xf32>
    %175 = vector.broadcast %1 : vector<24x1xf32> to vector<24x3xf32>
    %176 = arith.mulf %174, %175 : vector<24x3xf32>
    %c23_i32_36 = arith.constant 23 : i32
    %177 = tpu.dynamic_rotate %173 by %c23_i32_36 dim 0 : vector<24x3xf32>, i32 -> vector<24x3xf32>
    %178 = vector.broadcast %2 : vector<24x1xf32> to vector<24x3xf32>
    %179 = arith.mulf %177, %178 : vector<24x3xf32>
    %180 = vector.broadcast %17 : vector<1x3xf32> to vector<24x3xf32>
    %181 = arith.mulf %176, %180 : vector<24x3xf32>
    %182 = vector.broadcast %21 : vector<1x3xf32> to vector<24x3xf32>
    %183 = arith.mulf %173, %182 : vector<24x3xf32>
    %184 = arith.addf %181, %183 : vector<24x3xf32>
    %185 = vector.broadcast %25 : vector<1x3xf32> to vector<24x3xf32>
    %186 = arith.mulf %179, %185 : vector<24x3xf32>
    %187 = arith.addf %184, %186 : vector<24x3xf32>
    %cst_37 = arith.constant dense<0.000000e+00> : vector<24xf32>
    %188 = vector.multi_reduction <add>, %187, %cst_37 [1] : vector<24x3xf32> to vector<24xf32>
    %189 = vector.shape_cast %188 : vector<24xf32> to vector<24x1xf32>
    %190 = vector.broadcast %11 : vector<1x1xf32> to vector<24x1xf32>
    %191 = arith.addf %189, %190 : vector<24x1xf32>
    %cst_38 = arith.constant 0.000000e+00 : f32
    %192 = vector.broadcast %cst_38 : f32 to vector<24x1xf32>
    %193 = arith.maximumf %191, %192 : vector<24x1xf32>
    %194 = arith.addf %152, %193 : vector<24x1xf32>
    %c1_i32_39 = arith.constant 1 : i32
    %195 = tpu.dynamic_rotate %194 by %c1_i32_39 dim 0 : vector<24x1xf32>, i32 -> vector<24x1xf32>
    %196 = arith.mulf %195, %1 : vector<24x1xf32>
    %c23_i32_40 = arith.constant 23 : i32
    %197 = tpu.dynamic_rotate %194 by %c23_i32_40 dim 0 : vector<24x1xf32>, i32 -> vector<24x1xf32>
    %198 = arith.mulf %197, %2 : vector<24x1xf32>
    %199 = vector.broadcast %196 : vector<24x1xf32> to vector<24x512xf32>
    %200 = vector.broadcast %5 : vector<1x512xf32> to vector<24x512xf32>
    %201 = arith.mulf %199, %200 : vector<24x512xf32>
    %202 = vector.broadcast %194 : vector<24x1xf32> to vector<24x512xf32>
    %203 = vector.broadcast %6 : vector<1x512xf32> to vector<24x512xf32>
    %204 = arith.mulf %202, %203 : vector<24x512xf32>
    %205 = arith.addf %201, %204 : vector<24x512xf32>
    %206 = vector.broadcast %198 : vector<24x1xf32> to vector<24x512xf32>
    %207 = vector.broadcast %7 : vector<1x512xf32> to vector<24x512xf32>
    %208 = arith.mulf %206, %207 : vector<24x512xf32>
    %209 = arith.addf %205, %208 : vector<24x512xf32>
    %210 = vector.broadcast %8 : vector<1x512xf32> to vector<24x512xf32>
    %211 = arith.addf %209, %210 : vector<24x512xf32>
    %cst_41 = arith.constant 0.000000e+00 : f32
    %212 = vector.broadcast %cst_41 : f32 to vector<24x512xf32>
    %213 = arith.maximumf %211, %212 : vector<24x512xf32>
    %214 = arith.truncf %213 : vector<24x512xf32> to vector<24x512xbf16>
    %cst_42 = arith.constant dense<0.000000e+00> : vector<24x3xf32>
    %215 = tpu.matmul %214, %9, %cst_42 {dimension_numbers = #tpu.dot_dimension_numbers<[1], [0], [0], [1], [0, 0, 1, 1], [], []>} : vector<24x512xbf16>, vector<512x3xbf16>, vector<24x3xf32> -> vector<24x3xf32>
    %c1_i32_43 = arith.constant 1 : i32
    %216 = tpu.dynamic_rotate %215 by %c1_i32_43 dim 0 : vector<24x3xf32>, i32 -> vector<24x3xf32>
    %217 = vector.broadcast %1 : vector<24x1xf32> to vector<24x3xf32>
    %218 = arith.mulf %216, %217 : vector<24x3xf32>
    %c23_i32_44 = arith.constant 23 : i32
    %219 = tpu.dynamic_rotate %215 by %c23_i32_44 dim 0 : vector<24x3xf32>, i32 -> vector<24x3xf32>
    %220 = vector.broadcast %2 : vector<24x1xf32> to vector<24x3xf32>
    %221 = arith.mulf %219, %220 : vector<24x3xf32>
    %222 = vector.broadcast %17 : vector<1x3xf32> to vector<24x3xf32>
    %223 = arith.mulf %218, %222 : vector<24x3xf32>
    %224 = vector.broadcast %21 : vector<1x3xf32> to vector<24x3xf32>
    %225 = arith.mulf %215, %224 : vector<24x3xf32>
    %226 = arith.addf %223, %225 : vector<24x3xf32>
    %227 = vector.broadcast %25 : vector<1x3xf32> to vector<24x3xf32>
    %228 = arith.mulf %221, %227 : vector<24x3xf32>
    %229 = arith.addf %226, %228 : vector<24x3xf32>
    %cst_45 = arith.constant dense<0.000000e+00> : vector<24xf32>
    %230 = vector.multi_reduction <add>, %229, %cst_45 [1] : vector<24x3xf32> to vector<24xf32>
    %231 = vector.shape_cast %230 : vector<24xf32> to vector<24x1xf32>
    %232 = vector.broadcast %11 : vector<1x1xf32> to vector<24x1xf32>
    %233 = arith.addf %231, %232 : vector<24x1xf32>
    %cst_46 = arith.constant 0.000000e+00 : f32
    %234 = vector.broadcast %cst_46 : f32 to vector<24x1xf32>
    %235 = arith.maximumf %233, %234 : vector<24x1xf32>
    %236 = arith.addf %194, %235 : vector<24x1xf32>
    %c0_47 = arith.constant 0 : index
    %c0_48 = arith.constant 0 : index
    %237 = vector.load %arg5[%c0_47, %c0_48] : memref<2x24xf32, #tpu.memory_space<vmem>>, vector<2x24xf32>
    %238 = vector.broadcast %236 : vector<24x1xf32> to vector<24x2xf32>
    %239 = arith.mulf %238, %3 : vector<24x2xf32>
    %cst_49 = arith.constant dense<0.000000e+00> : vector<2x2xf32>
    %240 = tpu.matmul %237, %239, %cst_49 {dimension_numbers = #tpu.dot_dimension_numbers<[1], [0], [0], [1], [0, 0, 1, 1], [], []>} : vector<2x24xf32>, vector<24x2xf32>, vector<2x2xf32> -> vector<2x2xf32>
    %241 = vector.broadcast %12 : vector<1x2xf32> to vector<2x2xf32>
    %242 = arith.addf %240, %241 : vector<2x2xf32>
    %cst_50 = arith.constant dense<0xFF800000> : vector<2xf32>
    %243 = vector.multi_reduction <maximumf>, %242, %cst_50 [1] : vector<2x2xf32> to vector<2xf32>
    %244 = vector.shape_cast %243 : vector<2xf32> to vector<2x1xf32>
    %245 = vector.broadcast %244 : vector<2x1xf32> to vector<2x2xf32>
    %246 = arith.subf %242, %245 : vector<2x2xf32>
    %247 = math.exp %246 : vector<2x2xf32>
    %cst_51 = arith.constant dense<0.000000e+00> : vector<2xf32>
    %248 = vector.multi_reduction <add>, %247, %cst_51 [1] : vector<2x2xf32> to vector<2xf32>
    %249 = vector.shape_cast %248 : vector<2xf32> to vector<2x1xf32>
    %250 = tpu.reciprocal %249 {approx = true} : vector<2x1xf32> -> vector<2x1xf32>
    %251 = vector.broadcast %250 : vector<2x1xf32> to vector<2x2xf32>
    %252 = arith.mulf %247, %251 : vector<2x2xf32>
    %c0_52 = arith.constant 0 : index
    %c0_53 = arith.constant 0 : index
    %253 = vector.load %arg7[%c0_52, %c0_53] : memref<2x2xf32, #tpu.memory_space<vmem>>, vector<2x2xf32>
    tpu.vector_store %arg7[%c0_52, %c0_53], %252 {strides = array<i32>} : memref<2x2xf32, #tpu.memory_space<vmem>>, vector<2x2xf32>,
    return
  }
  func.func @transform_0(%arg0: i32) -> (i32, i32) {
    %c0_i32 = arith.constant 0 : i32
    %c0_i32_0 = arith.constant 0 : i32
    %c0_i32_1 = arith.constant 0 : i32
    return %c0_i32, %c0_i32_0 : i32, i32
  }
  func.func @transform_1(%arg0: i32) -> (i32, i32) {
    %c0_i32 = arith.constant 0 : i32
    %c0_i32_0 = arith.constant 0 : i32
    %c0_i32_1 = arith.constant 0 : i32
    return %c0_i32, %c0_i32_0 : i32, i32
  }
  func.func @transform_2(%arg0: i32) -> (i32, i32) {
    %c0_i32 = arith.constant 0 : i32
    %c0_i32_0 = arith.constant 0 : i32
    %c0_i32_1 = arith.constant 0 : i32
    return %c0_i32, %c0_i32_0 : i32, i32
  }
  func.func @transform_3(%arg0: i32) -> (i32, i32) {
    %c0_i32 = arith.constant 0 : i32
    %c0_i32_0 = arith.constant 0 : i32
    %c0_i32_1 = arith.constant 0 : i32
    return %c0_i32, %c0_i32_0 : i32, i32
  }
  func.func @transform_4(%arg0: i32) -> (i32, i32) {
    %c0_i32 = arith.constant 0 : i32
    %c0_i32_0 = arith.constant 0 : i32
    %c0_i32_1 = arith.constant 0 : i32
    return %c0_i32, %c0_i32_0 : i32, i32
  }
  func.func @transform_5(%arg0: i32) -> (i32, i32) {
    %c0_i32 = arith.constant 0 : i32
    %c0_i32_0 = arith.constant 0 : i32
    %c0_i32_1 = arith.constant 0 : i32
    return %c0_i32, %c0_i32_0 : i32, i32
  }
  func.func @transform_6(%arg0: i32) -> (i32, i32) {
    %c0_i32 = arith.constant 0 : i32
    %c0_i32_0 = arith.constant 0 : i32
    %c0_i32_1 = arith.constant 0 : i32
    return %c0_i32, %c0_i32_0 : i32, i32
  }
}

</mosaic_0001>

<llo_original>
// kernel: forward.1
$region0: #{forward.1}
  #allocation0 [shape = 'u32[]', space=smem, size = 0x4, offset = 0x4, fixed_abs, tag = 'smem constant byte address 0x4 - core index']
  #allocation1 [shape = 'u32[72,128]{1,0:T(1,128)}', space=vmem, size = 0x9000, scoped, tag = 'internal scratch']
  %s0 = inlined_call_operand.vmem [shape: f32[24,1], index: 0, kind: input, shape index: {}]
  %s1 = inlined_call_operand.vmem [shape: f32[24,4], index: 1, kind: input, shape index: {}]
  %s2 = inlined_call_operand.vmem [shape: f32[4,512], index: 2, kind: input, shape index: {}]
  %s3 = inlined_call_operand.hbm [shape: bf16[512,3], index: 3, kind: input, shape index: {}]
  %s4 = inlined_call_operand.vmem [shape: f32[2,24], index: 4, kind: input, shape index: {}]
  %s5 = inlined_call_operand.vmem [shape: f32[1,3], index: 5, kind: input, shape index: {}]
  %s6 = inlined_call_operand.hbm [shape: f32[2,2], index: 6, kind: output, shape index: {}]
  %s7 = sld [smem:[#allocation0]]
  $region38: #{forward.1} parent=0
    _
  %s9 = ssub.s32 1, %s7
  %s10 = scalar_select 0, %s9, %s7
  $region1: #{forward.1} parent=0
    #allocation2 [shape = 'u8[131072]{0}', space=vmem, size = 0x20000, scoped, tag = 'input window, operand 3, single buffered']
    #allocation3 [shape = 's32[1]{0}', space=sflag, size = 0x4, scoped, tag = 'scoped memory for forward.1']
    #allocation4 [shape = 's32[1]{0}', space=sflag, size = 0x4, scoped, tag = 'scoped memory for forward.1']
    #allocation5 [shape = 'u8[1024]{0}', space=vmem, size = 0x400, scoped, tag = 'output window, operand 0, single buffered']
    %11 = vsyncpa [#allocation3], 0
    %12 = vsyncpa [#allocation4], 0
    // Predicated region
    $region2: #{forward.1} parent=1 // pred_check
      _
    $region3: #{forward.1} parent=1 // pred_check_branch
      %14 = sbr.rel (0) target = $region5
    $region4: #{forward.1} parent=1 // pred_region
      _
    $region5: #{forward.1} parent=1 // pred_fallthru
      _
    // Predicated region
    $region6: #{forward.1} parent=1 // pred_check
      _
    $region7: #{forward.1} parent=1 // pred_check_branch
      %16 = sbr.rel (0) target = $region9
    $region8: #{forward.1} parent=1 // pred_region
      _
    $region9: #{forward.1} parent=1 // pred_fallthru
      _
    // Predicated region
    $region10: #{forward.1} parent=1 // pred_check
      _
    $region11: #{forward.1} parent=1 // pred_check_branch
      %18 = sbr.rel (0) target = $region13
    $region12: #{forward.1} parent=1 // pred_region
      _
    $region13: #{forward.1} parent=1 // pred_fallthru
      _
    // Predicated region
    $region14: #{forward.1} parent=1 // pred_check
      _
    $region15: #{forward.1} parent=1 // pred_check_branch
      %20 = sbr.rel (0) target = $region17
    $region16: #{forward.1} parent=1 // pred_region
      %22 = vsyncadd [#allocation3], 0
      %s23 = sshll.u32 %s3, 4
      %s24 = int_to_ptr.hbm [resolvable:$true] %s23
      %s25 = sshll.u32 [#allocation2], 4
      %s26 = int_to_ptr.vmem [resolvable:$true] %s25
      %31 = dma.hbm_to_vmem [thread:$0]  %s24, 4096, %s26, [#allocation3], 64, 64, 4
    $region17: #{forward.1} parent=1 // pred_fallthru
      _
    // Predicated region
    $region18: #{forward.1} parent=1 // pred_check
      _
    $region19: #{forward.1} parent=1 // pred_check_branch
      %33 = sbr.rel (0) target = $region21
    $region20: #{forward.1} parent=1 // pred_region
      _
    $region21: #{forward.1} parent=1 // pred_fallthru
      _
    // Predicated region
    $region22: #{forward.1} parent=1 // pred_check
      _
    $region23: #{forward.1} parent=1 // pred_check_branch
      %35 = sbr.rel (0) target = $region25
    $region24: #{forward.1} parent=1 // pred_region
      _
    $region25: #{forward.1} parent=1 // pred_fallthru
      _
    // Predicated region
    $region26: #{forward.1} parent=1 // pred_check
      _
    $region27: #{forward.1} parent=1 // pred_check_branch
      %37 = sbr.rel (0) target = $region29
    $region28: #{forward.1} parent=1 // pred_region
      %39 = dma.done [#allocation3], 4096
    $region29: #{forward.1} parent=1 // pred_fallthru
      _
    %v40 = vld [vmem:[%s1] sm:$0xff]
    %v41 = vld [vmem:[%s1 + $0x8] sm:$0xff]
    %v42 = vld [vmem:[%s1 + $0x10] sm:$0xff]
    %v43 = vld [vmem:[%s2] sm:$0xff]
    %v44 = vld [vmem:[%s2 + $0x8] sm:$0xff]
    %v45 = vld [vmem:[#allocation2] sm:$0xf]
    %v46 = vld [vmem:[#allocation2 + $0x4] sm:$0xf]
    %v47 = vld [vmem:[#allocation2 + $0x8] sm:$0xf]
    %v48 = vld [vmem:[#allocation2 + $0xc] sm:$0xf]
    %v49 = vld [vmem:[#allocation2 + $0x10] sm:$0xf]
    %v50 = vld [vmem:[#allocation2 + $0x14] sm:$0xf]
    %v51 = vld [vmem:[#allocation2 + $0x18] sm:$0xf]
    %v52 = vld [vmem:[#allocation2 + $0x1c] sm:$0xf]
    %v53 = vld [vmem:[#allocation2 + $0x20] sm:$0xf]
    %v54 = vld [vmem:[#allocation2 + $0x24] sm:$0xf]
    %v55 = vld [vmem:[#allocation2 + $0x28] sm:$0xf]
    %v56 = vld [vmem:[#allocation2 + $0x2c] sm:$0xf]
    %v57 = vld [vmem:[#allocation2 + $0x30] sm:$0xf]
    %v58 = vld [vmem:[#allocation2 + $0x34] sm:$0xf]
    %v59 = vld [vmem:[#allocation2 + $0x38] sm:$0xf]
    %v60 = vld [vmem:[#allocation2 + $0x3c] sm:$0xf]
    %v61 = vld [vmem:[#allocation2 + $0x40] sm:$0xf]
    %v62 = vld [vmem:[#allocation2 + $0x44] sm:$0xf]
    %v63 = vld [vmem:[#allocation2 + $0x48] sm:$0xf]
    %v64 = vld [vmem:[#allocation2 + $0x4c] sm:$0xf]
    %v65 = vld [vmem:[#allocation2 + $0x50] sm:$0xf]
    %v66 = vld [vmem:[#allocation2 + $0x54] sm:$0xf]
    %v67 = vld [vmem:[#allocation2 + $0x58] sm:$0xf]
    %v68 = vld [vmem:[#allocation2 + $0x5c] sm:$0xf]
    %v69 = vld [vmem:[#allocation2 + $0x60] sm:$0xf]
    %v70 = vld [vmem:[#allocation2 + $0x64] sm:$0xf]
    %v71 = vld [vmem:[#allocation2 + $0x68] sm:$0xf]
    %v72 = vld [vmem:[#allocation2 + $0x6c] sm:$0xf]
    %v73 = vld [vmem:[#allocation2 + $0x70] sm:$0xf]
    %v74 = vld [vmem:[#allocation2 + $0x74] sm:$0xf]
    %v75 = vld [vmem:[#allocation2 + $0x78] sm:$0xf]
    %v76 = vld [vmem:[#allocation2 + $0x7c] sm:$0xf]
    %v77 = vld [vmem:[#allocation2 + $0x80] sm:$0xf]
    %v78 = vld [vmem:[#allocation2 + $0x84] sm:$0xf]
    %v79 = vld [vmem:[#allocation2 + $0x88] sm:$0xf]
    %v80 = vld [vmem:[#allocation2 + $0x8c] sm:$0xf]
    %v81 = vld [vmem:[#allocation2 + $0x90] sm:$0xf]
    %v82 = vld [vmem:[#allocation2 + $0x94] sm:$0xf]
    %v83 = vld [vmem:[#allocation2 + $0x98] sm:$0xf]
    %v84 = vld [vmem:[#allocation2 + $0x9c] sm:$0xf]
    %v85 = vld [vmem:[#allocation2 + $0xa0] sm:$0xf]
    %v86 = vld [vmem:[#allocation2 + $0xa4] sm:$0xf]
    %v87 = vld [vmem:[#allocation2 + $0xa8] sm:$0xf]
    %v88 = vld [vmem:[#allocation2 + $0xac] sm:$0xf]
    %v89 = vld [vmem:[#allocation2 + $0xb0] sm:$0xf]
    %v90 = vld [vmem:[#allocation2 + $0xb4] sm:$0xf]
    %v91 = vld [vmem:[#allocation2 + $0xb8] sm:$0xf]
    %v92 = vld [vmem:[#allocation2 + $0xbc] sm:$0xf]
    %v93 = vld [vmem:[#allocation2 + $0xc0] sm:$0xf]
    %v94 = vld [vmem:[#allocation2 + $0xc4] sm:$0xf]
    %v95 = vld [vmem:[#allocation2 + $0xc8] sm:$0xf]
    %v96 = vld [vmem:[#allocation2 + $0xcc] sm:$0xf]
    %v97 = vld [vmem:[#allocation2 + $0xd0] sm:$0xf]
    %v98 = vld [vmem:[#allocation2 + $0xd4] sm:$0xf]
    %v99 = vld [vmem:[#allocation2 + $0xd8] sm:$0xf]
    %v100 = vld [vmem:[#allocation2 + $0xdc] sm:$0xf]
    %v101 = vld [vmem:[#allocation2 + $0xe0] sm:$0xf]
    %v102 = vld [vmem:[#allocation2 + $0xe4] sm:$0xf]
    %v103 = vld [vmem:[#allocation2 + $0xe8] sm:$0xf]
    %v104 = vld [vmem:[#allocation2 + $0xec] sm:$0xf]
    %v105 = vld [vmem:[#allocation2 + $0xf0] sm:$0xf]
    %v106 = vld [vmem:[#allocation2 + $0xf4] sm:$0xf]
    %v107 = vld [vmem:[#allocation2 + $0xf8] sm:$0xf]
    %v108 = vld [vmem:[#allocation2 + $0xfc] sm:$0xf]
    %v109 = vld [vmem:[%s5] sm:$0x1]
    %v110 = vlaneseq
    %v111 = vand.u32 %v110, 127
    %vm112 = vcmp.eq.s32.totalorder %v111, 0
    %v113 = vsel %vm112, 1, 0
    %v114 = vcvt.s32.f32 %v113
    %vm115 = vcmp.eq.s32.totalorder %v111, 1
    %v116 = vsel %vm115, 1, 0
    %v117 = vcvt.s32.f32 %v116
    %vm118 = vcmp.eq.s32.totalorder %v111, 2
    %v119 = vsel %vm118, 1, 0
    %v120 = vcvt.s32.f32 %v119
    %v121 = vld [vmem:[%s0] sm:$0xff]
    %v122 = vld [vmem:[%s0 + $0x8] sm:$0xff]
    %v123 = vld [vmem:[%s0 + $0x10] sm:$0xff]
    %v124 = vrot.slane %v121, 7
    %v125 = vrot.slane %v122, 7
    %v126 = vrot.slane %v123, 7
    %v127 = vlaneseq
    %v128 = vshrl.u32 %v127, 7
    %vm129 = vcmp.lt.s32.totalorder %v128, 1
    %v130 = vsel %vm129, %v125, %v126
    %v131 = vsel %vm129, %v124, %v125
    %v132 = vsel %vm129, %v126, %v124
    %v133 = vmul.f32 %v132, %v40
    %v134 = vmul.f32 %v131, %v41
    %v135 = vmul.f32 %v130, %v42
    %v136 = vrot.slane %v121, 1
    %v137 = vrot.slane %v122, 1
    %v138 = vrot.slane %v123, 1
    %vm139 = vcmp.lt.s32.totalorder %v128, 7
    %v140 = vsel %vm139, %v137, %v138
    %v141 = vsel %vm139, %v136, %v137
    %v142 = vsel %vm139, %v138, %v136
    %146 = vrot.lane.b32.xlu0 %v40, 127
    %v147 = vpop.permute.xlu0 %146
    %148 = vrot.lane.b32.xlu0 %v41, 127
    %v149 = vpop.permute.xlu0 %148
    %150 = vrot.lane.b32.xlu0 %v42, 127
    %v151 = vpop.permute.xlu0 %150
    %v155 = vmul.f32 %v141, %v147
    %v156 = vmul.f32 %v140, %v149
    %v157 = vmul.f32 %v142, %v151
    %159 = vset.pattern.permute.xlu0 0
    %160 = vperm.xlu0 %159, %v133
    %v161 = vpop.permute.xlu0 %160
    %164 = vset.pattern.permute.xlu0 0
    %165 = vperm.xlu0 %164, %v134
    %v166 = vpop.permute.xlu0 %165
    %169 = vset.pattern.permute.xlu0 0
    %170 = vperm.xlu0 %169, %v135
    %v171 = vpop.permute.xlu0 %170
    %v175 = vperm.slane %v43, 0
    %v176 = vperm.slane %v43, 4
    %v177 = vperm.slane %v44, 0
    %v178 = vperm.slane %v44, 4
    %v183 = vperm.slane %v175, 0
    %v184 = vperm.slane %v176, 0
    %v185 = vperm.slane %v177, 0
    %v186 = vperm.slane %v178, 0
    %v187 = vmul.f32 %v161, %v183
    %v188 = vmul.f32 %v161, %v184
    %v189 = vmul.f32 %v161, %v185
    %v190 = vmul.f32 %v161, %v186
    %v191 = vmul.f32 %v166, %v183
    %v192 = vmul.f32 %v166, %v184
    %v193 = vmul.f32 %v166, %v185
    %v194 = vmul.f32 %v166, %v186
    %v195 = vmul.f32 %v171, %v183
    %v196 = vmul.f32 %v171, %v184
    %v197 = vmul.f32 %v171, %v185
    %v198 = vmul.f32 %v171, %v186
    %200 = vset.pattern.permute.xlu0 0
    %201 = vperm.xlu0 %200, %v121
    %v202 = vpop.permute.xlu0 %201
    %205 = vset.pattern.permute.xlu0 0
    %206 = vperm.xlu0 %205, %v122
    %v207 = vpop.permute.xlu0 %206
    %210 = vset.pattern.permute.xlu0 0
    %211 = vperm.xlu0 %210, %v123
    %v212 = vpop.permute.xlu0 %211
    %v214 = vperm.slane %v43, 1
    %v215 = vperm.slane %v43, 5
    %v216 = vperm.slane %v44, 1
    %v217 = vperm.slane %v44, 5
    %v222 = vperm.slane %v214, 1
    %v223 = vperm.slane %v215, 1
    %v224 = vperm.slane %v216, 1
    %v225 = vperm.slane %v217, 1
    %v226 = vmul.f32 %v202, %v222
    %v227 = vmul.f32 %v202, %v223
    %v228 = vmul.f32 %v202, %v224
    %v229 = vmul.f32 %v202, %v225
    %v230 = vmul.f32 %v207, %v222
    %v231 = vmul.f32 %v207, %v223
    %v232 = vmul.f32 %v207, %v224
    %v233 = vmul.f32 %v207, %v225
    %v234 = vmul.f32 %v212, %v222
    %v235 = vmul.f32 %v212, %v223
    %v236 = vmul.f32 %v212, %v224
    %v237 = vmul.f32 %v212, %v225
    %v238 = vadd.f32 %v187, %v226
    %v239 = vadd.f32 %v188, %v227
    %v240 = vadd.f32 %v189, %v228
    %v241 = vadd.f32 %v190, %v229
    %v242 = vadd.f32 %v191, %v230
    %v243 = vadd.f32 %v192, %v231
    %v244 = vadd.f32 %v193, %v232
    %v245 = vadd.f32 %v194, %v233
    %v246 = vadd.f32 %v195, %v234
    %v247 = vadd.f32 %v196, %v235
    %v248 = vadd.f32 %v197, %v236
    %v249 = vadd.f32 %v198, %v237
    %251 = vset.pattern.permute.xlu0 0
    %252 = vperm.xlu0 %251, %v155
    %v253 = vpop.permute.xlu0 %252
    %256 = vset.pattern.permute.xlu0 0
    %257 = vperm.xlu0 %256, %v156
    %v258 = vpop.permute.xlu0 %257
    %261 = vset.pattern.permute.xlu0 0
    %262 = vperm.xlu0 %261, %v157
    %v263 = vpop.permute.xlu0 %262
    %v265 = vperm.slane %v43, 2
    %v266 = vperm.slane %v43, 6
    %v267 = vperm.slane %v44, 2
    %v268 = vperm.slane %v44, 6
    %v273 = vperm.slane %v265, 2
    %v274 = vperm.slane %v266, 2
    %v275 = vperm.slane %v267, 2
    %v276 = vperm.slane %v268, 2
    %v277 = vmul.f32 %v253, %v273
    %v278 = vmul.f32 %v253, %v274
    %v279 = vmul.f32 %v253, %v275
    %v280 = vmul.f32 %v253, %v276
    %v281 = vmul.f32 %v258, %v273
    %v282 = vmul.f32 %v258, %v274
    %v283 = vmul.f32 %v258, %v275
    %v284 = vmul.f32 %v258, %v276
    %v285 = vmul.f32 %v263, %v273
    %v286 = vmul.f32 %v263, %v274
    %v287 = vmul.f32 %v263, %v275
    %v288 = vmul.f32 %v263, %v276
    %v289 = vadd.f32 %v238, %v277
    %v290 = vadd.f32 %v239, %v278
    %v291 = vadd.f32 %v240, %v279
    %v292 = vadd.f32 %v241, %v280
    %v293 = vadd.f32 %v242, %v281
    %v294 = vadd.f32 %v243, %v282
    %v295 = vadd.f32 %v244, %v283
    %v296 = vadd.f32 %v245, %v284
    %v297 = vadd.f32 %v246, %v285
    %v298 = vadd.f32 %v247, %v286
    %v299 = vadd.f32 %v248, %v287
    %v300 = vadd.f32 %v249, %v288
    %v301 = vperm.slane %v43, 3
    %v302 = vperm.slane %v43, 7
    %v303 = vperm.slane %v44, 3
    %v304 = vperm.slane %v44, 7
    %v309 = vperm.slane %v301, 3
    %v310 = vperm.slane %v302, 3
    %v311 = vperm.slane %v303, 3
    %v312 = vperm.slane %v304, 3
    %v313 = vadd.f32 %v289, %v309
    %v314 = vadd.f32 %v290, %v310
    %v315 = vadd.f32 %v291, %v311
    %v316 = vadd.f32 %v292, %v312
    %v317 = vadd.f32 %v293, %v309
    %v318 = vadd.f32 %v294, %v310
    %v319 = vadd.f32 %v295, %v311
    %v320 = vadd.f32 %v296, %v312
    %v321 = vadd.f32 %v297, %v309
    %v322 = vadd.f32 %v298, %v310
    %v323 = vadd.f32 %v299, %v311
    %v324 = vadd.f32 %v300, %v312
    %v325 = vmax.f32 %v313, 0.0
    %v326 = vmax.f32 %v314, 0.0
    %v327 = vmax.f32 %v315, 0.0
    %v328 = vmax.f32 %v316, 0.0
    %v329 = vmax.f32 %v317, 0.0
    %v330 = vmax.f32 %v318, 0.0
    %v331 = vmax.f32 %v319, 0.0
    %v332 = vmax.f32 %v320, 0.0
    %v333 = vmax.f32 %v321, 0.0
    %v334 = vmax.f32 %v322, 0.0
    %v335 = vmax.f32 %v323, 0.0
    %v336 = vmax.f32 %v324, 0.0
    %v337 = vpack.c.bf16 %v329, %v325
    %v338 = vpack.c.bf16 %v330, %v326
    %v339 = vpack.c.bf16 %v331, %v327
    %v340 = vpack.c.bf16 %v332, %v328
    %v341 = vpack.c.bf16 %v333, %v333
    %v342 = vpack.c.bf16 %v334, %v334
    %v343 = vpack.c.bf16 %v335, %v335
    %v344 = vpack.c.bf16 %v336, %v336
    %v409 = vunpack.c.l.b16 %v45
    %v410 = vunpack.c.l.b16 %v46
    %v411 = vunpack.c.l.b16 %v47
    %v412 = vunpack.c.l.b16 %v48
    %v413 = vunpack.c.l.b16 %v49
    %v414 = vunpack.c.l.b16 %v50
    %v415 = vunpack.c.l.b16 %v51
    %v416 = vunpack.c.l.b16 %v52
    %v417 = vunpack.c.l.b16 %v53
    %v418 = vunpack.c.l.b16 %v54
    %v419 = vunpack.c.l.b16 %v55
    %v420 = vunpack.c.l.b16 %v56
    %v421 = vunpack.c.l.b16 %v57
    %v422 = vunpack.c.l.b16 %v58
    %v423 = vunpack.c.l.b16 %v59
    %v424 = vunpack.c.l.b16 %v60
    %v425 = vunpack.c.l.b16 %v61
    %v426 = vunpack.c.l.b16 %v62
    %v427 = vunpack.c.l.b16 %v63
    %v428 = vunpack.c.l.b16 %v64
    %v429 = vunpack.c.l.b16 %v65
    %v430 = vunpack.c.l.b16 %v66
    %v431 = vunpack.c.l.b16 %v67
    %v432 = vunpack.c.l.b16 %v68
    %v433 = vunpack.c.l.b16 %v69
    %v434 = vunpack.c.l.b16 %v70
    %v435 = vunpack.c.l.b16 %v71
    %v436 = vunpack.c.l.b16 %v72
    %v437 = vunpack.c.l.b16 %v73
    %v438 = vunpack.c.l.b16 %v74
    %v439 = vunpack.c.l.b16 %v75
    %v440 = vunpack.c.l.b16 %v76
    %v441 = vunpack.c.l.b16 %v77
    %v442 = vunpack.c.l.b16 %v78
    %v443 = vunpack.c.l.b16 %v79
    %v444 = vunpack.c.l.b16 %v80
    %v445 = vunpack.c.l.b16 %v81
    %v446 = vunpack.c.l.b16 %v82
    %v447 = vunpack.c.l.b16 %v83
    %v448 = vunpack.c.l.b16 %v84
    %v449 = vunpack.c.l.b16 %v85
    %v450 = vunpack.c.l.b16 %v86
    %v451 = vunpack.c.l.b16 %v87
    %v452 = vunpack.c.l.b16 %v88
    %v453 = vunpack.c.l.b16 %v89
    %v454 = vunpack.c.l.b16 %v90
    %v455 = vunpack.c.l.b16 %v91
    %v456 = vunpack.c.l.b16 %v92
    %v457 = vunpack.c.l.b16 %v93
    %v458 = vunpack.c.l.b16 %v94
    %v459 = vunpack.c.l.b16 %v95
    %v460 = vunpack.c.l.b16 %v96
    %v461 = vunpack.c.l.b16 %v97
    %v462 = vunpack.c.l.b16 %v98
    %v463 = vunpack.c.l.b16 %v99
    %v464 = vunpack.c.l.b16 %v100
    %v465 = vunpack.c.l.b16 %v101
    %v466 = vunpack.c.l.b16 %v102
    %v467 = vunpack.c.l.b16 %v103
    %v468 = vunpack.c.l.b16 %v104
    %v469 = vunpack.c.l.b16 %v105
    %v470 = vunpack.c.l.b16 %v106
    %v471 = vunpack.c.l.b16 %v107
    %v472 = vunpack.c.l.b16 %v108
    %v473 = vpack.c.b16 %v410, %v409
    %v474 = vpack.c.b16 %v412, %v411
    %v475 = vpack.c.b16 %v414, %v413
    %v476 = vpack.c.b16 %v416, %v415
    %v477 = vpack.c.b16 %v418, %v417
    %v478 = vpack.c.b16 %v420, %v419
    %v479 = vpack.c.b16 %v422, %v421
    %v480 = vpack.c.b16 %v424, %v423
    %v481 = vpack.c.b16 %v426, %v425
    %v482 = vpack.c.b16 %v428, %v427
    %v483 = vpack.c.b16 %v430, %v429
    %v484 = vpack.c.b16 %v432, %v431
    %v485 = vpack.c.b16 %v434, %v433
    %v486 = vpack.c.b16 %v436, %v435
    %v487 = vpack.c.b16 %v438, %v437
    %v488 = vpack.c.b16 %v440, %v439
    %v489 = vpack.c.b16 %v442, %v441
    %v490 = vpack.c.b16 %v444, %v443
    %v491 = vpack.c.b16 %v446, %v445
    %v492 = vpack.c.b16 %v448, %v447
    %v493 = vpack.c.b16 %v450, %v449
    %v494 = vpack.c.b16 %v452, %v451
    %v495 = vpack.c.b16 %v454, %v453
    %v496 = vpack.c.b16 %v456, %v455
    %v497 = vpack.c.b16 %v458, %v457
    %v498 = vpack.c.b16 %v460, %v459
    %v499 = vpack.c.b16 %v462, %v461
    %v500 = vpack.c.b16 %v464, %v463
    %v501 = vpack.c.b16 %v466, %v465
    %v502 = vpack.c.b16 %v468, %v467
    %v503 = vpack.c.b16 %v470, %v469
    %v504 = vpack.c.b16 %v472, %v471
    %537 = vmatpush.bf16.msra.mxu0 %v480
    %538 = vmatpush.bf16.msra.mxu0 %v479
    %539 = vmatpush.bf16.msra.mxu0 %v478
    %540 = vmatpush.bf16.msra.mxu0 %v477
    %541 = vmatpush.bf16.msra.mxu0 %v476
    %542 = vmatpush.bf16.msra.mxu0 %v475
    %543 = vmatpush.bf16.msra.mxu0 %v474
    %544 = vmatpush.bf16.msra.mxu0 %v473
    %545 = vmatmul.bf16.gmra.mxu0 %v337
    %v546 = vpop.f32.mrf.mxu0
    %v547 = vadd.f32 0.0, %v546
    %v548 = vpop.f32.mrf.mxu0
    %v549 = vadd.f32 0.0, %v548
    %550 = vmatmul.bf16.gmra.mxu0 %v341
    %v551 = vpop.f32.mrf.mxu0
    %v552 = vadd.f32 0.0, %v551
    %v553 = vpop.f32.mrf.mxu0
    %554 = vdwg.mxu0
    %555 = vmatpush.bf16.msra.mxu0 %v488
    %556 = vmatpush.bf16.msra.mxu0 %v487
    %557 = vmatpush.bf16.msra.mxu0 %v486
    %558 = vmatpush.bf16.msra.mxu0 %v485
    %559 = vmatpush.bf16.msra.mxu0 %v484
    %560 = vmatpush.bf16.msra.mxu0 %v483
    %561 = vmatpush.bf16.msra.mxu0 %v482
    %562 = vmatpush.bf16.msra.mxu0 %v481
    %563 = vmatmul.bf16.gmra.mxu0 %v338
    %v564 = vpop.f32.mrf.mxu0
    %v565 = vadd.f32 %v547, %v564
    %v566 = vpop.f32.mrf.mxu0
    %v567 = vadd.f32 %v549, %v566
    %568 = vmatmul.bf16.gmra.mxu0 %v342
    %v569 = vpop.f32.mrf.mxu0
    %v570 = vadd.f32 %v552, %v569
    %v571 = vpop.f32.mrf.mxu0
    %572 = vdwg.mxu0
    %573 = vmatpush.bf16.msra.mxu0 %v496
    %574 = vmatpush.bf16.msra.mxu0 %v495
    %575 = vmatpush.bf16.msra.mxu0 %v494
    %576 = vmatpush.bf16.msra.mxu0 %v493
    %577 = vmatpush.bf16.msra.mxu0 %v492
    %578 = vmatpush.bf16.msra.mxu0 %v491
    %579 = vmatpush.bf16.msra.mxu0 %v490
    %580 = vmatpush.bf16.msra.mxu0 %v489
    %581 = vmatmul.bf16.gmra.mxu0 %v339
    %v582 = vpop.f32.mrf.mxu0
    %v583 = vadd.f32 %v565, %v582
    %v584 = vpop.f32.mrf.mxu0
    %v585 = vadd.f32 %v567, %v584
    %586 = vmatmul.bf16.gmra.mxu0 %v343
    %v587 = vpop.f32.mrf.mxu0
    %v588 = vadd.f32 %v570, %v587
    %v589 = vpop.f32.mrf.mxu0
    %590 = vdwg.mxu0
    %591 = vmatpush.bf16.msra.mxu0 %v504
    %592 = vmatpush.bf16.msra.mxu0 %v503
    %593 = vmatpush.bf16.msra.mxu0 %v502
    %594 = vmatpush.bf16.msra.mxu0 %v501
    %595 = vmatpush.bf16.msra.mxu0 %v500
    %596 = vmatpush.bf16.msra.mxu0 %v499
    %597 = vmatpush.bf16.msra.mxu0 %v498
    %598 = vmatpush.bf16.msra.mxu0 %v497
    %599 = vmatmul.bf16.gmra.mxu0 %v340
    %v600 = vpop.f32.mrf.mxu0
    %v601 = vadd.f32 %v583, %v600
    %v602 = vpop.f32.mrf.mxu0
    %v603 = vadd.f32 %v585, %v602
    %604 = vmatmul.bf16.gmra.mxu0 %v344
    %v605 = vpop.f32.mrf.mxu0
    %v606 = vadd.f32 %v588, %v605
    %v607 = vpop.f32.mrf.mxu0
    %608 = vdwg.mxu0
    %v609 = vrot.slane %v601, 7
    %v610 = vrot.slane %v603, 7
    %v611 = vrot.slane %v606, 7
    %v612 = vsel %vm129, %v610, %v611
    %v613 = vsel %vm129, %v609, %v610
    %v614 = vsel %vm129, %v611, %v609
    %615 = vset.pattern.permute.xlu0 0
    %616 = vperm.xlu0 %615, %v40
    %v617 = vpop.permute.xlu0 %616
    %619 = vset.pattern.permute.xlu0 0
    %620 = vperm.xlu0 %619, %v41
    %v621 = vpop.permute.xlu0 %620
    %623 = vset.pattern.permute.xlu0 0
    %624 = vperm.xlu0 %623, %v42
    %v625 = vpop.permute.xlu0 %624
    %v627 = vmul.f32 %v614, %v617
    %v628 = vmul.f32 %v613, %v621
    %v629 = vmul.f32 %v612, %v625
    %v630 = vrot.slane %v601, 1
    %v631 = vrot.slane %v603, 1
    %v632 = vrot.slane %v606, 1
    %v633 = vsel %vm139, %v631, %v632
    %v634 = vsel %vm139, %v630, %v631
    %v635 = vsel %vm139, %v632, %v630
    %636 = vset.pattern.permute.xlu0 1
    %637 = vperm.xlu0 %636, %v40
    %v638 = vpop.permute.xlu0 %637
    %640 = vset.pattern.permute.xlu0 1
    %641 = vperm.xlu0 %640, %v41
    %v642 = vpop.permute.xlu0 %641
    %644 = vset.pattern.permute.xlu0 1
    %645 = vperm.xlu0 %644, %v42
    %v646 = vpop.permute.xlu0 %645
    %v648 = vmul.f32 %v634, %v638
    %v649 = vmul.f32 %v633, %v642
    %v650 = vmul.f32 %v635, %v646
    %v651 = vmul.f32 %v627, %v114
    %v652 = vmul.f32 %v628, %v114
    %v653 = vmul.f32 %v629, %v114
    %v654 = vmul.f32 %v601, %v117
    %v655 = vmul.f32 %v603, %v117
    %v656 = vmul.f32 %v606, %v117
    %v657 = vadd.f32 %v651, %v654
    %v658 = vadd.f32 %v652, %v655
    %v659 = vadd.f32 %v653, %v656
    %v660 = vmul.f32 %v648, %v120
    %v661 = vmul.f32 %v649, %v120
    %v662 = vmul.f32 %v650, %v120
    %v663 = vadd.f32 %v657, %v660
    %v664 = vadd.f32 %v658, %v661
    %v665 = vadd.f32 %v659, %v662
    %vm666 = vcmask 23552
    %v667 = vsel %vm666, %v663, 0.0
    %668 = vadd.xlane.f32.xlu0 %v667
    %v669 = vpop.xlane.xlu0 %668
    %v670 = vsel %vm666, %v664, 0.0
    %671 = vadd.xlane.f32.xlu0 %v670
    %v672 = vpop.xlane.xlu0 %671
    %v673 = vsel %vm666, %v665, 0.0
    %674 = vadd.xlane.f32.xlu0 %v673
    %v675 = vpop.xlane.xlu0 %674
    %v677 = vperm.slane %v109, 0
    %v679 = vadd.f32 %v669, %v677
    %v680 = vadd.f32 %v672, %v677
    %v681 = vadd.f32 %v675, %v677
    %v682 = vmax.f32 %v679, 0.0
    %v683 = vmax.f32 %v680, 0.0
    %v684 = vmax.f32 %v681, 0.0
    %v685 = vadd.f32 %v121, %v682
    %v686 = vadd.f32 %v122, %v683
    %v687 = vadd.f32 %v123, %v684
    %v688 = vrot.slane %v685, 7
    %v689 = vrot.slane %v686, 7
    %v690 = vrot.slane %v687, 7
    %v691 = vsel %vm129, %v689, %v690
    %v692 = vsel %vm129, %v688, %v689
    %v693 = vsel %vm129, %v690, %v688
    %v694 = vmul.f32 %v693, %v40
    %v695 = vmul.f32 %v692, %v41
    %v696 = vmul.f32 %v691, %v42
    %v697 = vrot.slane %v685, 1
    %v698 = vrot.slane %v686, 1
    %v699 = vrot.slane %v687, 1
    %v700 = vsel %vm139, %v698, %v699
    %v701 = vsel %vm139, %v697, %v698
    %v702 = vsel %vm139, %v699, %v697
    %v703 = vmul.f32 %v701, %v147
    %v704 = vmul.f32 %v700, %v149
    %v705 = vmul.f32 %v702, %v151
    %707 = vset.pattern.permute.xlu0 0
    %708 = vperm.xlu0 %707, %v694
    %v709 = vpop.permute.xlu0 %708
    %712 = vset.pattern.permute.xlu0 0
    %713 = vperm.xlu0 %712, %v695
    %v714 = vpop.permute.xlu0 %713
    %717 = vset.pattern.permute.xlu0 0
    %718 = vperm.xlu0 %717, %v696
    %v719 = vpop.permute.xlu0 %718
    %v721 = vmul.f32 %v709, %v183
    %v722 = vmul.f32 %v709, %v184
    %v723 = vmul.f32 %v709, %v185
    %v724 = vmul.f32 %v709, %v186
    %v725 = vmul.f32 %v714, %v183
    %v726 = vmul.f32 %v714, %v184
    %v727 = vmul.f32 %v714, %v185
    %v728 = vmul.f32 %v714, %v186
    %v729 = vmul.f32 %v719, %v183
    %v730 = vmul.f32 %v719, %v184
    %v731 = vmul.f32 %v719, %v185
    %v732 = vmul.f32 %v719, %v186
    %734 = vset.pattern.permute.xlu0 0
    %735 = vperm.xlu0 %734, %v685
    %v736 = vpop.permute.xlu0 %735
    %739 = vset.pattern.permute.xlu0 0
    %740 = vperm.xlu0 %739, %v686
    %v741 = vpop.permute.xlu0 %740
    %744 = vset.pattern.permute.xlu0 0
    %745 = vperm.xlu0 %744, %v687
    %v746 = vpop.permute.xlu0 %745
    %v748 = vmul.f32 %v736, %v222
    %v749 = vmul.f32 %v736, %v223
    %v750 = vmul.f32 %v736, %v224
    %v751 = vmul.f32 %v736, %v225
    %v752 = vmul.f32 %v741, %v222
    %v753 = vmul.f32 %v741, %v223
    %v754 = vmul.f32 %v741, %v224
    %v755 = vmul.f32 %v741, %v225
    %v756 = vmul.f32 %v746, %v222
    %v757 = vmul.f32 %v746, %v223
    %v758 = vmul.f32 %v746, %v224
    %v759 = vmul.f32 %v746, %v225
    %v760 = vadd.f32 %v721, %v748
    %v761 = vadd.f32 %v722, %v749
    %v762 = vadd.f32 %v723, %v750
    %v763 = vadd.f32 %v724, %v751
    %v764 = vadd.f32 %v725, %v752
    %v765 = vadd.f32 %v726, %v753
    %v766 = vadd.f32 %v727, %v754
    %v767 = vadd.f32 %v728, %v755
    %v768 = vadd.f32 %v729, %v756
    %v769 = vadd.f32 %v730, %v757
    %v770 = vadd.f32 %v731, %v758
    %v771 = vadd.f32 %v732, %v759
    %773 = vset.pattern.permute.xlu0 0
    %774 = vperm.xlu0 %773, %v703
    %v775 = vpop.permute.xlu0 %774
    %778 = vset.pattern.permute.xlu0 0
    %779 = vperm.xlu0 %778, %v704
    %v780 = vpop.permute.xlu0 %779
    %783 = vset.pattern.permute.xlu0 0
    %784 = vperm.xlu0 %783, %v705
    %v785 = vpop.permute.xlu0 %784
    %v787 = vmul.f32 %v775, %v273
    %v788 = vmul.f32 %v775, %v274
    %v789 = vmul.f32 %v775, %v275
    %v790 = vmul.f32 %v775, %v276
    %v791 = vmul.f32 %v780, %v273
    %v792 = vmul.f32 %v780, %v274
    %v793 = vmul.f32 %v780, %v275
    %v794 = vmul.f32 %v780, %v276
    %v795 = vmul.f32 %v785, %v273
    %v796 = vmul.f32 %v785, %v274
    %v797 = vmul.f32 %v785, %v275
    %v798 = vmul.f32 %v785, %v276
    %v799 = vadd.f32 %v760, %v787
    %v800 = vadd.f32 %v761, %v788
    %v801 = vadd.f32 %v762, %v789
    %v802 = vadd.f32 %v763, %v790
    %v803 = vadd.f32 %v764, %v791
    %v804 = vadd.f32 %v765, %v792
    %v805 = vadd.f32 %v766, %v793
    %v806 = vadd.f32 %v767, %v794
    %v807 = vadd.f32 %v768, %v795
    %v808 = vadd.f32 %v769, %v796
    %v809 = vadd.f32 %v770, %v797
    %v810 = vadd.f32 %v771, %v798
    %v811 = vadd.f32 %v799, %v309
    %v812 = vadd.f32 %v800, %v310
    %v813 = vadd.f32 %v801, %v311
    %v814 = vadd.f32 %v802, %v312
    %v815 = vadd.f32 %v803, %v309
    %v816 = vadd.f32 %v804, %v310
    %v817 = vadd.f32 %v805, %v311
    %v818 = vadd.f32 %v806, %v312
    %v819 = vadd.f32 %v807, %v309
    %v820 = vadd.f32 %v808, %v310
    %v821 = vadd.f32 %v809, %v311
    %v822 = vadd.f32 %v810, %v312
    %v823 = vmax.f32 %v811, 0.0
    %v824 = vmax.f32 %v812, 0.0
    %v825 = vmax.f32 %v813, 0.0
    %v826 = vmax.f32 %v814, 0.0
    %v827 = vmax.f32 %v815, 0.0
    %v828 = vmax.f32 %v816, 0.0
    %v829 = vmax.f32 %v817, 0.0
    %v830 = vmax.f32 %v818, 0.0
    %v831 = vmax.f32 %v819, 0.0
    %v832 = vmax.f32 %v820, 0.0
    %v833 = vmax.f32 %v821, 0.0
    %v834 = vmax.f32 %v822, 0.0
    %v835 = vpack.c.bf16 %v827, %v823
    %v836 = vpack.c.bf16 %v828, %v824
    %v837 = vpack.c.bf16 %v829, %v825
    %v838 = vpack.c.bf16 %v830, %v826
    %v839 = vpack.c.bf16 %v831, %v831
    %v840 = vpack.c.bf16 %v832, %v832
    %v841 = vpack.c.bf16 %v833, %v833
    %v842 = vpack.c.bf16 %v834, %v834
    %843 = vmatpush.bf16.msra.mxu0 %v480
    %844 = vmatpush.bf16.msra.mxu0 %v479
    %845 = vmatpush.bf16.msra.mxu0 %v478
    %846 = vmatpush.bf16.msra.mxu0 %v477
    %847 = vmatpush.bf16.msra.mxu0 %v476
    %848 = vmatpush.bf16.msra.mxu0 %v475
    %849 = vmatpush.bf16.msra.mxu0 %v474
    %850 = vmatpush.bf16.msra.mxu0 %v473
    %851 = vmatmul.bf16.gmra.mxu0 %v835
    %v852 = vpop.f32.mrf.mxu0
    %v853 = vadd.f32 0.0, %v852
    %v854 = vpop.f32.mrf.mxu0
    %v855 = vadd.f32 0.0, %v854
    %856 = vmatmul.bf16.gmra.mxu0 %v839
    %v857 = vpop.f32.mrf.mxu0
    %v858 = vadd.f32 0.0, %v857
    %v859 = vpop.f32.mrf.mxu0
    %860 = vdwg.mxu0
    %861 = vmatpush.bf16.msra.mxu0 %v488
    %862 = vmatpush.bf16.msra.mxu0 %v487
    %863 = vmatpush.bf16.msra.mxu0 %v486
    %864 = vmatpush.bf16.msra.mxu0 %v485
    %865 = vmatpush.bf16.msra.mxu0 %v484
    %866 = vmatpush.bf16.msra.mxu0 %v483
    %867 = vmatpush.bf16.msra.mxu0 %v482
    %868 = vmatpush.bf16.msra.mxu0 %v481
    %869 = vmatmul.bf16.gmra.mxu0 %v836
    %v870 = vpop.f32.mrf.mxu0
    %v871 = vadd.f32 %v853, %v870
    %v872 = vpop.f32.mrf.mxu0
    %v873 = vadd.f32 %v855, %v872
    %874 = vmatmul.bf16.gmra.mxu0 %v840
    %v875 = vpop.f32.mrf.mxu0
    %v876 = vadd.f32 %v858, %v875
    %v877 = vpop.f32.mrf.mxu0
    %878 = vdwg.mxu0
    %879 = vmatpush.bf16.msra.mxu0 %v496
    %880 = vmatpush.bf16.msra.mxu0 %v495
    %881 = vmatpush.bf16.msra.mxu0 %v494
    %882 = vmatpush.bf16.msra.mxu0 %v493
    %883 = vmatpush.bf16.msra.mxu0 %v492
    %884 = vmatpush.bf16.msra.mxu0 %v491
    %885 = vmatpush.bf16.msra.mxu0 %v490
    %886 = vmatpush.bf16.msra.mxu0 %v489
    %887 = vmatmul.bf16.gmra.mxu0 %v837
    %v888 = vpop.f32.mrf.mxu0
    %v889 = vadd.f32 %v871, %v888
    %v890 = vpop.f32.mrf.mxu0
    %v891 = vadd.f32 %v873, %v890
    %892 = vmatmul.bf16.gmra.mxu0 %v841
    %v893 = vpop.f32.mrf.mxu0
    %v894 = vadd.f32 %v876, %v893
    %v895 = vpop.f32.mrf.mxu0
    %896 = vdwg.mxu0
    %897 = vmatpush.bf16.msra.mxu0 %v504
    %898 = vmatpush.bf16.msra.mxu0 %v503
    %899 = vmatpush.bf16.msra.mxu0 %v502
    %900 = vmatpush.bf16.msra.mxu0 %v501
    %901 = vmatpush.bf16.msra.mxu0 %v500
    %902 = vmatpush.bf16.msra.mxu0 %v499
    %903 = vmatpush.bf16.msra.mxu0 %v498
    %904 = vmatpush.bf16.msra.mxu0 %v497
    %905 = vmatmul.bf16.gmra.mxu0 %v838
    %v906 = vpop.f32.mrf.mxu0
    %v907 = vadd.f32 %v889, %v906
    %v908 = vpop.f32.mrf.mxu0
    %v909 = vadd.f32 %v891, %v908
    %910 = vmatmul.bf16.gmra.mxu0 %v842
    %v911 = vpop.f32.mrf.mxu0
    %v912 = vadd.f32 %v894, %v911
    %v913 = vpop.f32.mrf.mxu0
    %914 = vdwg.mxu0
    %v915 = vrot.slane %v907, 7
    %v916 = vrot.slane %v909, 7
    %v917 = vrot.slane %v912, 7
    %v918 = vsel %vm129, %v916, %v917
    %v919 = vsel %vm129, %v915, %v916
    %v920 = vsel %vm129, %v917, %v915
    %v921 = vmul.f32 %v920, %v617
    %v922 = vmul.f32 %v919, %v621
    %v923 = vmul.f32 %v918, %v625
    %v924 = vrot.slane %v907, 1
    %v925 = vrot.slane %v909, 1
    %v926 = vrot.slane %v912, 1
    %v927 = vsel %vm139, %v925, %v926
    %v928 = vsel %vm139, %v924, %v925
    %v929 = vsel %vm139, %v926, %v924
    %v930 = vmul.f32 %v928, %v638
    %v931 = vmul.f32 %v927, %v642
    %v932 = vmul.f32 %v929, %v646
    %v933 = vmul.f32 %v921, %v114
    %v934 = vmul.f32 %v922, %v114
    %v935 = vmul.f32 %v923, %v114
    %v936 = vmul.f32 %v907, %v117
    %v937 = vmul.f32 %v909, %v117
    %v938 = vmul.f32 %v912, %v117
    %v939 = vadd.f32 %v933, %v936
    %v940 = vadd.f32 %v934, %v937
    %v941 = vadd.f32 %v935, %v938
    %v942 = vmul.f32 %v930, %v120
    %v943 = vmul.f32 %v931, %v120
    %v944 = vmul.f32 %v932, %v120
    %v945 = vadd.f32 %v939, %v942
    %v946 = vadd.f32 %v940, %v943
    %v947 = vadd.f32 %v941, %v944
    %v948 = vsel %vm666, %v945, 0.0
    %949 = vadd.xlane.f32.xlu0 %v948
    %v950 = vpop.xlane.xlu0 %949
    %v951 = vsel %vm666, %v946, 0.0
    %952 = vadd.xlane.f32.xlu0 %v951
    %v953 = vpop.xlane.xlu0 %952
    %v954 = vsel %vm666, %v947, 0.0
    %955 = vadd.xlane.f32.xlu0 %v954
    %v956 = vpop.xlane.xlu0 %955
    %v957 = vadd.f32 %v950, %v677
    %v958 = vadd.f32 %v953, %v677
    %v959 = vadd.f32 %v956, %v677
    %v960 = vmax.f32 %v957, 0.0
    %v961 = vmax.f32 %v958, 0.0
    %v962 = vmax.f32 %v959, 0.0
    %v963 = vadd.f32 %v685, %v960
    %v964 = vadd.f32 %v686, %v961
    %v965 = vadd.f32 %v687, %v962
    %v966 = vrot.slane %v963, 7
    %v967 = vrot.slane %v964, 7
    %v968 = vrot.slane %v965, 7
    %v969 = vsel %vm129, %v967, %v968
    %v970 = vsel %vm129, %v966, %v967
    %v971 = vsel %vm129, %v968, %v966
    %v972 = vmul.f32 %v971, %v40
    %v973 = vmul.f32 %v970, %v41
    %v974 = vmul.f32 %v969, %v42
    %v975 = vrot.slane %v963, 1
    %v976 = vrot.slane %v964, 1
    %v977 = vrot.slane %v965, 1
    %v978 = vsel %vm139, %v976, %v977
    %v979 = vsel %vm139, %v975, %v976
    %v980 = vsel %vm139, %v977, %v975
    %v981 = vmul.f32 %v979, %v147
    %v982 = vmul.f32 %v978, %v149
    %v983 = vmul.f32 %v980, %v151
    %985 = vset.pattern.permute.xlu0 0
    %986 = vperm.xlu0 %985, %v972
    %v987 = vpop.permute.xlu0 %986
    %990 = vset.pattern.permute.xlu0 0
    %991 = vperm.xlu0 %990, %v973
    %v992 = vpop.permute.xlu0 %991
    %995 = vset.pattern.permute.xlu0 0
    %996 = vperm.xlu0 %995, %v974
    %v997 = vpop.permute.xlu0 %996
    %v999 = vmul.f32 %v987, %v183
    %v1000 = vmul.f32 %v987, %v184
    %v1001 = vmul.f32 %v987, %v185
    %v1002 = vmul.f32 %v987, %v186
    %v1003 = vmul.f32 %v992, %v183
    %v1004 = vmul.f32 %v992, %v184
    %v1005 = vmul.f32 %v992, %v185
    %v1006 = vmul.f32 %v992, %v186
    %v1007 = vmul.f32 %v997, %v183
    %v1008 = vmul.f32 %v997, %v184
    %v1009 = vmul.f32 %v997, %v185
    %v1010 = vmul.f32 %v997, %v186
    %1012 = vset.pattern.permute.xlu0 0
    %1013 = vperm.xlu0 %1012, %v963
    %v1014 = vpop.permute.xlu0 %1013
    %1017 = vset.pattern.permute.xlu0 0
    %1018 = vperm.xlu0 %1017, %v964
    %v1019 = vpop.permute.xlu0 %1018
    %1022 = vset.pattern.permute.xlu0 0
    %1023 = vperm.xlu0 %1022, %v965
    %v1024 = vpop.permute.xlu0 %1023
    %v1026 = vmul.f32 %v1014, %v222
    %v1027 = vmul.f32 %v1014, %v223
    %v1028 = vmul.f32 %v1014, %v224
    %v1029 = vmul.f32 %v1014, %v225
    %v1030 = vmul.f32 %v1019, %v222
    %v1031 = vmul.f32 %v1019, %v223
    %v1032 = vmul.f32 %v1019, %v224
    %v1033 = vmul.f32 %v1019, %v225
    %v1034 = vmul.f32 %v1024, %v222
    %v1035 = vmul.f32 %v1024, %v223
    %v1036 = vmul.f32 %v1024, %v224
    %v1037 = vmul.f32 %v1024, %v225
    %v1038 = vadd.f32 %v999, %v1026
    %v1039 = vadd.f32 %v1000, %v1027
    %v1040 = vadd.f32 %v1001, %v1028
    %v1041 = vadd.f32 %v1002, %v1029
    %v1042 = vadd.f32 %v1003, %v1030
    %v1043 = vadd.f32 %v1004, %v1031
    %v1044 = vadd.f32 %v1005, %v1032
    %v1045 = vadd.f32 %v1006, %v1033
    %v1046 = vadd.f32 %v1007, %v1034
    %v1047 = vadd.f32 %v1008, %v1035
    %v1048 = vadd.f32 %v1009, %v1036
    %v1049 = vadd.f32 %v1010, %v1037
    %1051 = vset.pattern.permute.xlu0 0
    %1052 = vperm.xlu0 %1051, %v981
    %v1053 = vpop.permute.xlu0 %1052
    %1056 = vset.pattern.permute.xlu0 0
    %1057 = vperm.xlu0 %1056, %v982
    %v1058 = vpop.permute.xlu0 %1057
    %1061 = vset.pattern.permute.xlu0 0
    %1062 = vperm.xlu0 %1061, %v983
    %v1063 = vpop.permute.xlu0 %1062
    %v1065 = vmul.f32 %v1053, %v273
    %v1066 = vmul.f32 %v1053, %v274
    %v1067 = vmul.f32 %v1053, %v275
    %v1068 = vmul.f32 %v1053, %v276
    %v1069 = vmul.f32 %v1058, %v273
    %v1070 = vmul.f32 %v1058, %v274
    %v1071 = vmul.f32 %v1058, %v275
    %v1072 = vmul.f32 %v1058, %v276
    %v1073 = vmul.f32 %v1063, %v273
    %v1074 = vmul.f32 %v1063, %v274
    %v1075 = vmul.f32 %v1063, %v275
    %v1076 = vmul.f32 %v1063, %v276
    %v1077 = vadd.f32 %v1038, %v1065
    %v1078 = vadd.f32 %v1039, %v1066
    %v1079 = vadd.f32 %v1040, %v1067
    %v1080 = vadd.f32 %v1041, %v1068
    %v1081 = vadd.f32 %v1042, %v1069
    %v1082 = vadd.f32 %v1043, %v1070
    %v1083 = vadd.f32 %v1044, %v1071
    %v1084 = vadd.f32 %v1045, %v1072
    %v1085 = vadd.f32 %v1046, %v1073
    %v1086 = vadd.f32 %v1047, %v1074
    %v1087 = vadd.f32 %v1048, %v1075
    %v1088 = vadd.f32 %v1049, %v1076
    %v1089 = vadd.f32 %v1077, %v309
    %v1090 = vadd.f32 %v1078, %v310
    %v1091 = vadd.f32 %v1079, %v311
    %v1092 = vadd.f32 %v1080, %v312
    %v1093 = vadd.f32 %v1081, %v309
    %v1094 = vadd.f32 %v1082, %v310
    %v1095 = vadd.f32 %v1083, %v311
    %v1096 = vadd.f32 %v1084, %v312
    %v1097 = vadd.f32 %v1085, %v309
    %v1098 = vadd.f32 %v1086, %v310
    %v1099 = vadd.f32 %v1087, %v311
    %v1100 = vadd.f32 %v1088, %v312
    %v1101 = vmax.f32 %v1089, 0.0
    %v1102 = vmax.f32 %v1090, 0.0
    %v1103 = vmax.f32 %v1091, 0.0
    %v1104 = vmax.f32 %v1092, 0.0
    %v1105 = vmax.f32 %v1093, 0.0
    %v1106 = vmax.f32 %v1094, 0.0
    %v1107 = vmax.f32 %v1095, 0.0
    %v1108 = vmax.f32 %v1096, 0.0
    %v1109 = vmax.f32 %v1097, 0.0
    %v1110 = vmax.f32 %v1098, 0.0
    %v1111 = vmax.f32 %v1099, 0.0
    %v1112 = vmax.f32 %v1100, 0.0
    %v1113 = vpack.c.bf16 %v1105, %v1101
    %v1114 = vpack.c.bf16 %v1106, %v1102
    %v1115 = vpack.c.bf16 %v1107, %v1103
    %v1116 = vpack.c.bf16 %v1108, %v1104
    %v1117 = vpack.c.bf16 %v1109, %v1109
    %v1118 = vpack.c.bf16 %v1110, %v1110
    %v1119 = vpack.c.bf16 %v1111, %v1111
    %v1120 = vpack.c.bf16 %v1112, %v1112
    %1121 = vmatpush.bf16.msra.mxu0 %v480
    %1122 = vmatpush.bf16.msra.mxu0 %v479
    %1123 = vmatpush.bf16.msra.mxu0 %v478
    %1124 = vmatpush.bf16.msra.mxu0 %v477
    %1125 = vmatpush.bf16.msra.mxu0 %v476
    %1126 = vmatpush.bf16.msra.mxu0 %v475
    %1127 = vmatpush.bf16.msra.mxu0 %v474
    %1128 = vmatpush.bf16.msra.mxu0 %v473
    %1129 = vmatmul.bf16.gmra.mxu0 %v1113
    %v1130 = vpop.f32.mrf.mxu0
    %v1131 = vadd.f32 0.0, %v1130
    %v1132 = vpop.f32.mrf.mxu0
    %v1133 = vadd.f32 0.0, %v1132
    %1134 = vmatmul.bf16.gmra.mxu0 %v1117
    %v1135 = vpop.f32.mrf.mxu0
    %v1136 = vadd.f32 0.0, %v1135
    %v1137 = vpop.f32.mrf.mxu0
    %1138 = vdwg.mxu0
    %1139 = vmatpush.bf16.msra.mxu0 %v488
    %1140 = vmatpush.bf16.msra.mxu0 %v487
    %1141 = vmatpush.bf16.msra.mxu0 %v486
    %1142 = vmatpush.bf16.msra.mxu0 %v485
    %1143 = vmatpush.bf16.msra.mxu0 %v484
    %1144 = vmatpush.bf16.msra.mxu0 %v483
    %1145 = vmatpush.bf16.msra.mxu0 %v482
    %1146 = vmatpush.bf16.msra.mxu0 %v481
    %1147 = vmatmul.bf16.gmra.mxu0 %v1114
    %v1148 = vpop.f32.mrf.mxu0
    %v1149 = vadd.f32 %v1131, %v1148
    %v1150 = vpop.f32.mrf.mxu0
    %v1151 = vadd.f32 %v1133, %v1150
    %1152 = vmatmul.bf16.gmra.mxu0 %v1118
    %v1153 = vpop.f32.mrf.mxu0
    %v1154 = vadd.f32 %v1136, %v1153
    %v1155 = vpop.f32.mrf.mxu0
    %1156 = vdwg.mxu0
    %1157 = vmatpush.bf16.msra.mxu0 %v496
    %1158 = vmatpush.bf16.msra.mxu0 %v495
    %1159 = vmatpush.bf16.msra.mxu0 %v494
    %1160 = vmatpush.bf16.msra.mxu0 %v493
    %1161 = vmatpush.bf16.msra.mxu0 %v492
    %1162 = vmatpush.bf16.msra.mxu0 %v491
    %1163 = vmatpush.bf16.msra.mxu0 %v490
    %1164 = vmatpush.bf16.msra.mxu0 %v489
    %1165 = vmatmul.bf16.gmra.mxu0 %v1115
    %v1166 = vpop.f32.mrf.mxu0
    %v1167 = vadd.f32 %v1149, %v1166
    %v1168 = vpop.f32.mrf.mxu0
    %v1169 = vadd.f32 %v1151, %v1168
    %1170 = vmatmul.bf16.gmra.mxu0 %v1119
    %v1171 = vpop.f32.mrf.mxu0
    %v1172 = vadd.f32 %v1154, %v1171
    %v1173 = vpop.f32.mrf.mxu0
    %1174 = vdwg.mxu0
    %1175 = vmatpush.bf16.msra.mxu0 %v504
    %1176 = vmatpush.bf16.msra.mxu0 %v503
    %1177 = vmatpush.bf16.msra.mxu0 %v502
    %1178 = vmatpush.bf16.msra.mxu0 %v501
    %1179 = vmatpush.bf16.msra.mxu0 %v500
    %1180 = vmatpush.bf16.msra.mxu0 %v499
    %1181 = vmatpush.bf16.msra.mxu0 %v498
    %1182 = vmatpush.bf16.msra.mxu0 %v497
    %1183 = vmatmul.bf16.gmra.mxu0 %v1116
    %v1184 = vpop.f32.mrf.mxu0
    %v1185 = vadd.f32 %v1167, %v1184
    %v1186 = vpop.f32.mrf.mxu0
    %v1187 = vadd.f32 %v1169, %v1186
    %1188 = vmatmul.bf16.gmra.mxu0 %v1120
    %v1189 = vpop.f32.mrf.mxu0
    %v1190 = vadd.f32 %v1172, %v1189
    %v1191 = vpop.f32.mrf.mxu0
    %1192 = vdwg.mxu0
    %v1193 = vrot.slane %v1185, 7
    %v1194 = vrot.slane %v1187, 7
    %v1195 = vrot.slane %v1190, 7
    %v1196 = vsel %vm129, %v1194, %v1195
    %v1197 = vsel %vm129, %v1193, %v1194
    %v1198 = vsel %vm129, %v1195, %v1193
    %v1199 = vmul.f32 %v1198, %v617
    %v1200 = vmul.f32 %v1197, %v621
    %v1201 = vmul.f32 %v1196, %v625
    %v1202 = vrot.slane %v1185, 1
    %v1203 = vrot.slane %v1187, 1
    %v1204 = vrot.slane %v1190, 1
    %v1205 = vsel %vm139, %v1203, %v1204
    %v1206 = vsel %vm139, %v1202, %v1203
    %v1207 = vsel %vm139, %v1204, %v1202
    %v1208 = vmul.f32 %v1206, %v638
    %v1209 = vmul.f32 %v1205, %v642
    %v1210 = vmul.f32 %v1207, %v646
    %v1211 = vmul.f32 %v1199, %v114
    %v1212 = vmul.f32 %v1200, %v114
    %v1213 = vmul.f32 %v1201, %v114
    %v1214 = vmul.f32 %v1185, %v117
    %v1215 = vmul.f32 %v1187, %v117
    %v1216 = vmul.f32 %v1190, %v117
    %v1217 = vadd.f32 %v1211, %v1214
    %v1218 = vadd.f32 %v1212, %v1215
    %v1219 = vadd.f32 %v1213, %v1216
    %v1220 = vmul.f32 %v1208, %v120
    %v1221 = vmul.f32 %v1209, %v120
    %v1222 = vmul.f32 %v1210, %v120
    %v1223 = vadd.f32 %v1217, %v1220
    %v1224 = vadd.f32 %v1218, %v1221
    %v1225 = vadd.f32 %v1219, %v1222
    %v1226 = vsel %vm666, %v1223, 0.0
    %1227 = vadd.xlane.f32.xlu0 %v1226
    %v1228 = vpop.xlane.xlu0 %1227
    %v1229 = vsel %vm666, %v1224, 0.0
    %1230 = vadd.xlane.f32.xlu0 %v1229
    %v1231 = vpop.xlane.xlu0 %1230
    %v1232 = vsel %vm666, %v1225, 0.0
    %1233 = vadd.xlane.f32.xlu0 %v1232
    %v1234 = vpop.xlane.xlu0 %1233
    %v1235 = vadd.f32 %v1228, %v677
    %v1236 = vadd.f32 %v1231, %v677
    %v1237 = vadd.f32 %v1234, %v677
    %v1238 = vmax.f32 %v1235, 0.0
    %v1239 = vmax.f32 %v1236, 0.0
    %v1240 = vmax.f32 %v1237, 0.0
    %v1241 = vadd.f32 %v963, %v1238
    %v1242 = vadd.f32 %v964, %v1239
    %v1243 = vadd.f32 %v965, %v1240
    %v1244 = vrot.slane %v1241, 7
    %v1245 = vrot.slane %v1242, 7
    %v1246 = vrot.slane %v1243, 7
    %v1247 = vsel %vm129, %v1245, %v1246
    %v1248 = vsel %vm129, %v1244, %v1245
    %v1249 = vsel %vm129, %v1246, %v1244
    %v1250 = vmul.f32 %v1249, %v40
    %v1251 = vmul.f32 %v1248, %v41
    %v1252 = vmul.f32 %v1247, %v42
    %v1253 = vrot.slane %v1241, 1
    %v1254 = vrot.slane %v1242, 1
    %v1255 = vrot.slane %v1243, 1
    %v1256 = vsel %vm139, %v1254, %v1255
    %v1257 = vsel %vm139, %v1253, %v1254
    %v1258 = vsel %vm139, %v1255, %v1253
    %v1259 = vmul.f32 %v1257, %v147
    %v1260 = vmul.f32 %v1256, %v149
    %v1261 = vmul.f32 %v1258, %v151
    %1263 = vset.pattern.permute.xlu0 0
    %1264 = vperm.xlu0 %1263, %v1250
    %v1265 = vpop.permute.xlu0 %1264
    %1268 = vset.pattern.permute.xlu0 0
    %1269 = vperm.xlu0 %1268, %v1251
    %v1270 = vpop.permute.xlu0 %1269
    %1273 = vset.pattern.permute.xlu0 0
    %1274 = vperm.xlu0 %1273, %v1252
    %v1275 = vpop.permute.xlu0 %1274
    %v1277 = vmul.f32 %v1265, %v183
    %v1278 = vmul.f32 %v1265, %v184
    %v1279 = vmul.f32 %v1265, %v185
    %v1280 = vmul.f32 %v1265, %v186
    %v1281 = vmul.f32 %v1270, %v183
    %v1282 = vmul.f32 %v1270, %v184
    %v1283 = vmul.f32 %v1270, %v185
    %v1284 = vmul.f32 %v1270, %v186
    %v1285 = vmul.f32 %v1275, %v183
    %v1286 = vmul.f32 %v1275, %v184
    %v1287 = vmul.f32 %v1275, %v185
    %v1288 = vmul.f32 %v1275, %v186
    %1290 = vset.pattern.permute.xlu0 0
    %1291 = vperm.xlu0 %1290, %v1241
    %v1292 = vpop.permute.xlu0 %1291
    %1295 = vset.pattern.permute.xlu0 0
    %1296 = vperm.xlu0 %1295, %v1242
    %v1297 = vpop.permute.xlu0 %1296
    %1300 = vset.pattern.permute.xlu0 0
    %1301 = vperm.xlu0 %1300, %v1243
    %v1302 = vpop.permute.xlu0 %1301
    %v1304 = vmul.f32 %v1292, %v222
    %v1305 = vmul.f32 %v1292, %v223
    %v1306 = vmul.f32 %v1292, %v224
    %v1307 = vmul.f32 %v1292, %v225
    %v1308 = vmul.f32 %v1297, %v222
    %v1309 = vmul.f32 %v1297, %v223
    %v1310 = vmul.f32 %v1297, %v224
    %v1311 = vmul.f32 %v1297, %v225
    %v1312 = vmul.f32 %v1302, %v222
    %v1313 = vmul.f32 %v1302, %v223
    %v1314 = vmul.f32 %v1302, %v224
    %v1315 = vmul.f32 %v1302, %v225
    %v1316 = vadd.f32 %v1277, %v1304
    %v1317 = vadd.f32 %v1278, %v1305
    %v1318 = vadd.f32 %v1279, %v1306
    %v1319 = vadd.f32 %v1280, %v1307
    %v1320 = vadd.f32 %v1281, %v1308
    %v1321 = vadd.f32 %v1282, %v1309
    %v1322 = vadd.f32 %v1283, %v1310
    %v1323 = vadd.f32 %v1284, %v1311
    %v1324 = vadd.f32 %v1285, %v1312
    %v1325 = vadd.f32 %v1286, %v1313
    %v1326 = vadd.f32 %v1287, %v1314
    %v1327 = vadd.f32 %v1288, %v1315
    %1329 = vset.pattern.permute.xlu0 0
    %1330 = vperm.xlu0 %1329, %v1259
    %v1331 = vpop.permute.xlu0 %1330
    %1334 = vset.pattern.permute.xlu0 0
    %1335 = vperm.xlu0 %1334, %v1260
    %v1336 = vpop.permute.xlu0 %1335
    %1339 = vset.pattern.permute.xlu0 0
    %1340 = vperm.xlu0 %1339, %v1261
    %v1341 = vpop.permute.xlu0 %1340
    %v1343 = vmul.f32 %v1331, %v273
    %v1344 = vmul.f32 %v1331, %v274
    %v1345 = vmul.f32 %v1331, %v275
    %v1346 = vmul.f32 %v1331, %v276
    %v1347 = vmul.f32 %v1336, %v273
    %v1348 = vmul.f32 %v1336, %v274
    %v1349 = vmul.f32 %v1336, %v275
    %v1350 = vmul.f32 %v1336, %v276
    %v1351 = vmul.f32 %v1341, %v273
    %v1352 = vmul.f32 %v1341, %v274
    %v1353 = vmul.f32 %v1341, %v275
    %v1354 = vmul.f32 %v1341, %v276
    %v1355 = vadd.f32 %v1316, %v1343
    %v1356 = vadd.f32 %v1317, %v1344
    %v1357 = vadd.f32 %v1318, %v1345
    %v1358 = vadd.f32 %v1319, %v1346
    %v1359 = vadd.f32 %v1320, %v1347
    %v1360 = vadd.f32 %v1321, %v1348
    %v1361 = vadd.f32 %v1322, %v1349
    %v1362 = vadd.f32 %v1323, %v1350
    %v1363 = vadd.f32 %v1324, %v1351
    %v1364 = vadd.f32 %v1325, %v1352
    %v1365 = vadd.f32 %v1326, %v1353
    %v1366 = vadd.f32 %v1327, %v1354
    %v1367 = vadd.f32 %v1355, %v309
    %v1368 = vadd.f32 %v1356, %v310
    %v1369 = vadd.f32 %v1357, %v311
    %v1370 = vadd.f32 %v1358, %v312
    %v1371 = vadd.f32 %v1359, %v309
    %v1372 = vadd.f32 %v1360, %v310
    %v1373 = vadd.f32 %v1361, %v311
    %v1374 = vadd.f32 %v1362, %v312
    %v1375 = vadd.f32 %v1363, %v309
    %v1376 = vadd.f32 %v1364, %v310
    %v1377 = vadd.f32 %v1365, %v311
    %v1378 = vadd.f32 %v1366, %v312
    %v1379 = vmax.f32 %v1367, 0.0
    %v1380 = vmax.f32 %v1368, 0.0
    %v1381 = vmax.f32 %v1369, 0.0
    %v1382 = vmax.f32 %v1370, 0.0
    %v1383 = vmax.f32 %v1371, 0.0
    %v1384 = vmax.f32 %v1372, 0.0
    %v1385 = vmax.f32 %v1373, 0.0
    %v1386 = vmax.f32 %v1374, 0.0
    %v1387 = vmax.f32 %v1375, 0.0
    %v1388 = vmax.f32 %v1376, 0.0
    %v1389 = vmax.f32 %v1377, 0.0
    %v1390 = vmax.f32 %v1378, 0.0
    %v1391 = vpack.c.bf16 %v1383, %v1379
    %v1392 = vpack.c.bf16 %v1384, %v1380
    %v1393 = vpack.c.bf16 %v1385, %v1381
    %v1394 = vpack.c.bf16 %v1386, %v1382
    %v1395 = vpack.c.bf16 %v1387, %v1387
    %v1396 = vpack.c.bf16 %v1388, %v1388
    %v1397 = vpack.c.bf16 %v1389, %v1389
    %v1398 = vpack.c.bf16 %v1390, %v1390
    %1399 = vmatpush.bf16.msra.mxu0 %v480
    %1400 = vmatpush.bf16.msra.mxu0 %v479
    %1401 = vmatpush.bf16.msra.mxu0 %v478
    %1402 = vmatpush.bf16.msra.mxu0 %v477
    %1403 = vmatpush.bf16.msra.mxu0 %v476
    %1404 = vmatpush.bf16.msra.mxu0 %v475
    %1405 = vmatpush.bf16.msra.mxu0 %v474
    %1406 = vmatpush.bf16.msra.mxu0 %v473
    %1407 = vmatmul.bf16.gmra.mxu0 %v1391
    %v1408 = vpop.f32.mrf.mxu0
    %v1409 = vadd.f32 0.0, %v1408
    %v1410 = vpop.f32.mrf.mxu0
    %v1411 = vadd.f32 0.0, %v1410
    %1412 = vmatmul.bf16.gmra.mxu0 %v1395
    %v1413 = vpop.f32.mrf.mxu0
    %v1414 = vadd.f32 0.0, %v1413
    %v1415 = vpop.f32.mrf.mxu0
    %1416 = vdwg.mxu0
    %1417 = vmatpush.bf16.msra.mxu0 %v488
    %1418 = vmatpush.bf16.msra.mxu0 %v487
    %1419 = vmatpush.bf16.msra.mxu0 %v486
    %1420 = vmatpush.bf16.msra.mxu0 %v485
    %1421 = vmatpush.bf16.msra.mxu0 %v484
    %1422 = vmatpush.bf16.msra.mxu0 %v483
    %1423 = vmatpush.bf16.msra.mxu0 %v482
    %1424 = vmatpush.bf16.msra.mxu0 %v481
    %1425 = vmatmul.bf16.gmra.mxu0 %v1392
    %v1426 = vpop.f32.mrf.mxu0
    %v1427 = vadd.f32 %v1409, %v1426
    %v1428 = vpop.f32.mrf.mxu0
    %v1429 = vadd.f32 %v1411, %v1428
    %1430 = vmatmul.bf16.gmra.mxu0 %v1396
    %v1431 = vpop.f32.mrf.mxu0
    %v1432 = vadd.f32 %v1414, %v1431
    %v1433 = vpop.f32.mrf.mxu0
    %1434 = vdwg.mxu0
    %1435 = vmatpush.bf16.msra.mxu0 %v496
    %1436 = vmatpush.bf16.msra.mxu0 %v495
    %1437 = vmatpush.bf16.msra.mxu0 %v494
    %1438 = vmatpush.bf16.msra.mxu0 %v493
    %1439 = vmatpush.bf16.msra.mxu0 %v492
    %1440 = vmatpush.bf16.msra.mxu0 %v491
    %1441 = vmatpush.bf16.msra.mxu0 %v490
    %1442 = vmatpush.bf16.msra.mxu0 %v489
    %1443 = vmatmul.bf16.gmra.mxu0 %v1393
    %v1444 = vpop.f32.mrf.mxu0
    %v1445 = vadd.f32 %v1427, %v1444
    %v1446 = vpop.f32.mrf.mxu0
    %v1447 = vadd.f32 %v1429, %v1446
    %1448 = vmatmul.bf16.gmra.mxu0 %v1397
    %v1449 = vpop.f32.mrf.mxu0
    %v1450 = vadd.f32 %v1432, %v1449
    %v1451 = vpop.f32.mrf.mxu0
    %1452 = vdwg.mxu0
    %1453 = vmatpush.bf16.msra.mxu0 %v504
    %1454 = vmatpush.bf16.msra.mxu0 %v503
    %1455 = vmatpush.bf16.msra.mxu0 %v502
    %1456 = vmatpush.bf16.msra.mxu0 %v501
    %1457 = vmatpush.bf16.msra.mxu0 %v500
    %1458 = vmatpush.bf16.msra.mxu0 %v499
    %1459 = vmatpush.bf16.msra.mxu0 %v498
    %1460 = vmatpush.bf16.msra.mxu0 %v497
    %1461 = vmatmul.bf16.gmra.mxu0 %v1394
    %v1462 = vpop.f32.mrf.mxu0
    %v1463 = vadd.f32 %v1445, %v1462
    %v1464 = vpop.f32.mrf.mxu0
    %v1465 = vadd.f32 %v1447, %v1464
    %1466 = vmatmul.bf16.gmra.mxu0 %v1398
    %v1467 = vpop.f32.mrf.mxu0
    %v1468 = vadd.f32 %v1450, %v1467
    %v1469 = vpop.f32.mrf.mxu0
    %1470 = vdwg.mxu0
    %v1471 = vrot.slane %v1463, 7
    %v1472 = vrot.slane %v1465, 7
    %v1473 = vrot.slane %v1468, 7
    %v1474 = vsel %vm129, %v1472, %v1473
    %v1475 = vsel %vm129, %v1471, %v1472
    %v1476 = vsel %vm129, %v1473, %v1471
    %v1477 = vmul.f32 %v1476, %v617
    %v1478 = vmul.f32 %v1475, %v621
    %v1479 = vmul.f32 %v1474, %v625
    %v1480 = vrot.slane %v1463, 1
    %v1481 = vrot.slane %v1465, 1
    %v1482 = vrot.slane %v1468, 1
    %v1483 = vsel %vm139, %v1481, %v1482
    %v1484 = vsel %vm139, %v1480, %v1481
    %v1485 = vsel %vm139, %v1482, %v1480
    %v1486 = vmul.f32 %v1484, %v638
    %v1487 = vmul.f32 %v1483, %v642
    %v1488 = vmul.f32 %v1485, %v646
    %v1489 = vmul.f32 %v1477, %v114
    %v1490 = vmul.f32 %v1478, %v114
    %v1491 = vmul.f32 %v1479, %v114
    %v1492 = vmul.f32 %v1463, %v117
    %v1493 = vmul.f32 %v1465, %v117
    %v1494 = vmul.f32 %v1468, %v117
    %v1495 = vadd.f32 %v1489, %v1492
    %v1496 = vadd.f32 %v1490, %v1493
    %v1497 = vadd.f32 %v1491, %v1494
    %v1498 = vmul.f32 %v1486, %v120
    %v1499 = vmul.f32 %v1487, %v120
    %v1500 = vmul.f32 %v1488, %v120
    %v1501 = vadd.f32 %v1495, %v1498
    %v1502 = vadd.f32 %v1496, %v1499
    %v1503 = vadd.f32 %v1497, %v1500
    %v1504 = vsel %vm666, %v1501, 0.0
    %1505 = vadd.xlane.f32.xlu0 %v1504
    %v1506 = vpop.xlane.xlu0 %1505
    %v1507 = vsel %vm666, %v1502, 0.0
    %1508 = vadd.xlane.f32.xlu0 %v1507
    %v1509 = vpop.xlane.xlu0 %1508
    %v1510 = vsel %vm666, %v1503, 0.0
    %1511 = vadd.xlane.f32.xlu0 %v1510
    %v1512 = vpop.xlane.xlu0 %1511
    %v1513 = vadd.f32 %v1506, %v677
    %v1514 = vadd.f32 %v1509, %v677
    %v1515 = vadd.f32 %v1512, %v677
    %v1516 = vmax.f32 %v1513, 0.0
    %v1517 = vmax.f32 %v1514, 0.0
    %v1518 = vmax.f32 %v1515, 0.0
    %v1519 = vadd.f32 %v1241, %v1516
    %v1520 = vadd.f32 %v1242, %v1517
    %v1521 = vadd.f32 %v1243, %v1518
    %v1522 = vrot.slane %v1519, 7
    %v1523 = vrot.slane %v1520, 7
    %v1524 = vrot.slane %v1521, 7
    %v1525 = vsel %vm129, %v1523, %v1524
    %v1526 = vsel %vm129, %v1522, %v1523
    %v1527 = vsel %vm129, %v1524, %v1522
    %v1528 = vmul.f32 %v1527, %v40
    %v1529 = vmul.f32 %v1526, %v41
    %v1530 = vmul.f32 %v1525, %v42
    %v1531 = vrot.slane %v1519, 1
    %v1532 = vrot.slane %v1520, 1
    %v1533 = vrot.slane %v1521, 1
    %v1534 = vsel %vm139, %v1532, %v1533
    %v1535 = vsel %vm139, %v1531, %v1532
    %v1536 = vsel %vm139, %v1533, %v1531
    %v1537 = vmul.f32 %v1535, %v147
    %v1538 = vmul.f32 %v1534, %v149
    %v1539 = vmul.f32 %v1536, %v151
    %1541 = vset.pattern.permute.xlu0 0
    %1542 = vperm.xlu0 %1541, %v1528
    %v1543 = vpop.permute.xlu0 %1542
    %1546 = vset.pattern.permute.xlu0 0
    %1547 = vperm.xlu0 %1546, %v1529
    %v1548 = vpop.permute.xlu0 %1547
    %1551 = vset.pattern.permute.xlu0 0
    %1552 = vperm.xlu0 %1551, %v1530
    %v1553 = vpop.permute.xlu0 %1552
    %v1555 = vmul.f32 %v1543, %v183
    %v1556 = vmul.f32 %v1543, %v184
    %v1557 = vmul.f32 %v1543, %v185
    %v1558 = vmul.f32 %v1543, %v186
    %v1559 = vmul.f32 %v1548, %v183
    %v1560 = vmul.f32 %v1548, %v184
    %v1561 = vmul.f32 %v1548, %v185
    %v1562 = vmul.f32 %v1548, %v186
    %v1563 = vmul.f32 %v1553, %v183
    %v1564 = vmul.f32 %v1553, %v184
    %v1565 = vmul.f32 %v1553, %v185
    %v1566 = vmul.f32 %v1553, %v186
    %1568 = vset.pattern.permute.xlu0 0
    %1569 = vperm.xlu0 %1568, %v1519
    %v1570 = vpop.permute.xlu0 %1569
    %1573 = vset.pattern.permute.xlu0 0
    %1574 = vperm.xlu0 %1573, %v1520
    %v1575 = vpop.permute.xlu0 %1574
    %1578 = vset.pattern.permute.xlu0 0
    %1579 = vperm.xlu0 %1578, %v1521
    %v1580 = vpop.permute.xlu0 %1579
    %v1582 = vmul.f32 %v1570, %v222
    %v1583 = vmul.f32 %v1570, %v223
    %v1584 = vmul.f32 %v1570, %v224
    %v1585 = vmul.f32 %v1570, %v225
    %v1586 = vmul.f32 %v1575, %v222
    %v1587 = vmul.f32 %v1575, %v223
    %v1588 = vmul.f32 %v1575, %v224
    %v1589 = vmul.f32 %v1575, %v225
    %v1590 = vmul.f32 %v1580, %v222
    %v1591 = vmul.f32 %v1580, %v223
    %v1592 = vmul.f32 %v1580, %v224
    %v1593 = vmul.f32 %v1580, %v225
    %v1594 = vadd.f32 %v1555, %v1582
    %v1595 = vadd.f32 %v1556, %v1583
    %v1596 = vadd.f32 %v1557, %v1584
    %v1597 = vadd.f32 %v1558, %v1585
    %v1598 = vadd.f32 %v1559, %v1586
    %v1599 = vadd.f32 %v1560, %v1587
    %v1600 = vadd.f32 %v1561, %v1588
    %v1601 = vadd.f32 %v1562, %v1589
    %v1602 = vadd.f32 %v1563, %v1590
    %v1603 = vadd.f32 %v1564, %v1591
    %v1604 = vadd.f32 %v1565, %v1592
    %v1605 = vadd.f32 %v1566, %v1593
    %1607 = vset.pattern.permute.xlu0 0
    %1608 = vperm.xlu0 %1607, %v1537
    %v1609 = vpop.permute.xlu0 %1608
    %1612 = vset.pattern.permute.xlu0 0
    %1613 = vperm.xlu0 %1612, %v1538
    %v1614 = vpop.permute.xlu0 %1613
    %1617 = vset.pattern.permute.xlu0 0
    %1618 = vperm.xlu0 %1617, %v1539
    %v1619 = vpop.permute.xlu0 %1618
    %v1621 = vmul.f32 %v1609, %v273
    %v1622 = vmul.f32 %v1609, %v274
    %v1623 = vmul.f32 %v1609, %v275
    %v1624 = vmul.f32 %v1609, %v276
    %v1625 = vmul.f32 %v1614, %v273
    %v1626 = vmul.f32 %v1614, %v274
    %v1627 = vmul.f32 %v1614, %v275
    %v1628 = vmul.f32 %v1614, %v276
    %v1629 = vmul.f32 %v1619, %v273
    %v1630 = vmul.f32 %v1619, %v274
    %v1631 = vmul.f32 %v1619, %v275
    %v1632 = vmul.f32 %v1619, %v276
    %v1633 = vadd.f32 %v1594, %v1621
    %v1634 = vadd.f32 %v1595, %v1622
    %v1635 = vadd.f32 %v1596, %v1623
    %v1636 = vadd.f32 %v1597, %v1624
    %v1637 = vadd.f32 %v1598, %v1625
    %v1638 = vadd.f32 %v1599, %v1626
    %v1639 = vadd.f32 %v1600, %v1627
    %v1640 = vadd.f32 %v1601, %v1628
    %v1641 = vadd.f32 %v1602, %v1629
    %v1642 = vadd.f32 %v1603, %v1630
    %v1643 = vadd.f32 %v1604, %v1631
    %v1644 = vadd.f32 %v1605, %v1632
    %v1645 = vadd.f32 %v1633, %v309
    %v1646 = vadd.f32 %v1634, %v310
    %v1647 = vadd.f32 %v1635, %v311
    %v1648 = vadd.f32 %v1636, %v312
    %v1649 = vadd.f32 %v1637, %v309
    %v1650 = vadd.f32 %v1638, %v310
    %v1651 = vadd.f32 %v1639, %v311
    %v1652 = vadd.f32 %v1640, %v312
    %v1653 = vadd.f32 %v1641, %v309
    %v1654 = vadd.f32 %v1642, %v310
    %v1655 = vadd.f32 %v1643, %v311
    %v1656 = vadd.f32 %v1644, %v312
    %v1657 = vmax.f32 %v1645, 0.0
    %v1658 = vmax.f32 %v1646, 0.0
    %v1659 = vmax.f32 %v1647, 0.0
    %v1660 = vmax.f32 %v1648, 0.0
    %v1661 = vmax.f32 %v1649, 0.0
    %v1662 = vmax.f32 %v1650, 0.0
    %v1663 = vmax.f32 %v1651, 0.0
    %v1664 = vmax.f32 %v1652, 0.0
    %v1665 = vmax.f32 %v1653, 0.0
    %v1666 = vmax.f32 %v1654, 0.0
    %v1667 = vmax.f32 %v1655, 0.0
    %v1668 = vmax.f32 %v1656, 0.0
    %v1669 = vpack.c.bf16 %v1661, %v1657
    %v1670 = vpack.c.bf16 %v1662, %v1658
    %v1671 = vpack.c.bf16 %v1663, %v1659
    %v1672 = vpack.c.bf16 %v1664, %v1660
    %v1673 = vpack.c.bf16 %v1665, %v1665
    %v1674 = vpack.c.bf16 %v1666, %v1666
    %v1675 = vpack.c.bf16 %v1667, %v1667
    %v1676 = vpack.c.bf16 %v1668, %v1668
    %1677 = vmatpush.bf16.msra.mxu0 %v480
    %1678 = vmatpush.bf16.msra.mxu0 %v479
    %1679 = vmatpush.bf16.msra.mxu0 %v478
    %1680 = vmatpush.bf16.msra.mxu0 %v477
    %1681 = vmatpush.bf16.msra.mxu0 %v476
    %1682 = vmatpush.bf16.msra.mxu0 %v475
    %1683 = vmatpush.bf16.msra.mxu0 %v474
    %1684 = vmatpush.bf16.msra.mxu0 %v473
    %1685 = vmatmul.bf16.gmra.mxu0 %v1669
    %v1686 = vpop.f32.mrf.mxu0
    %v1687 = vadd.f32 0.0, %v1686
    %v1688 = vpop.f32.mrf.mxu0
    %v1689 = vadd.f32 0.0, %v1688
    %1690 = vmatmul.bf16.gmra.mxu0 %v1673
    %v1691 = vpop.f32.mrf.mxu0
    %v1692 = vadd.f32 0.0, %v1691
    %v1693 = vpop.f32.mrf.mxu0
    %1694 = vdwg.mxu0
    %1695 = vmatpush.bf16.msra.mxu0 %v488
    %1696 = vmatpush.bf16.msra.mxu0 %v487
    %1697 = vmatpush.bf16.msra.mxu0 %v486
    %1698 = vmatpush.bf16.msra.mxu0 %v485
    %1699 = vmatpush.bf16.msra.mxu0 %v484
    %1700 = vmatpush.bf16.msra.mxu0 %v483
    %1701 = vmatpush.bf16.msra.mxu0 %v482
    %1702 = vmatpush.bf16.msra.mxu0 %v481
    %1703 = vmatmul.bf16.gmra.mxu0 %v1670
    %v1704 = vpop.f32.mrf.mxu0
    %v1705 = vadd.f32 %v1687, %v1704
    %v1706 = vpop.f32.mrf.mxu0
    %v1707 = vadd.f32 %v1689, %v1706
    %1708 = vmatmul.bf16.gmra.mxu0 %v1674
    %v1709 = vpop.f32.mrf.mxu0
    %v1710 = vadd.f32 %v1692, %v1709
    %v1711 = vpop.f32.mrf.mxu0
    %1712 = vdwg.mxu0
    %1713 = vmatpush.bf16.msra.mxu0 %v496
    %1714 = vmatpush.bf16.msra.mxu0 %v495
    %1715 = vmatpush.bf16.msra.mxu0 %v494
    %1716 = vmatpush.bf16.msra.mxu0 %v493
    %1717 = vmatpush.bf16.msra.mxu0 %v492
    %1718 = vmatpush.bf16.msra.mxu0 %v491
    %1719 = vmatpush.bf16.msra.mxu0 %v490
    %1720 = vmatpush.bf16.msra.mxu0 %v489
    %1721 = vmatmul.bf16.gmra.mxu0 %v1671
    %v1722 = vpop.f32.mrf.mxu0
    %v1723 = vadd.f32 %v1705, %v1722
    %v1724 = vpop.f32.mrf.mxu0
    %v1725 = vadd.f32 %v1707, %v1724
    %1726 = vmatmul.bf16.gmra.mxu0 %v1675
    %v1727 = vpop.f32.mrf.mxu0
    %v1728 = vadd.f32 %v1710, %v1727
    %v1729 = vpop.f32.mrf.mxu0
    %1730 = vdwg.mxu0
    %1731 = vmatpush.bf16.msra.mxu0 %v504
    %1732 = vmatpush.bf16.msra.mxu0 %v503
    %1733 = vmatpush.bf16.msra.mxu0 %v502
    %1734 = vmatpush.bf16.msra.mxu0 %v501
    %1735 = vmatpush.bf16.msra.mxu0 %v500
    %1736 = vmatpush.bf16.msra.mxu0 %v499
    %1737 = vmatpush.bf16.msra.mxu0 %v498
    %1738 = vmatpush.bf16.msra.mxu0 %v497
    %1739 = vmatmul.bf16.gmra.mxu0 %v1672
    %v1740 = vpop.f32.mrf.mxu0
    %v1741 = vadd.f32 %v1723, %v1740
    %v1742 = vpop.f32.mrf.mxu0
    %v1743 = vadd.f32 %v1725, %v1742
    %1744 = vmatmul.bf16.gmra.mxu0 %v1676
    %v1745 = vpop.f32.mrf.mxu0
    %v1746 = vadd.f32 %v1728, %v1745
    %v1747 = vpop.f32.mrf.mxu0
    %1748 = vdwg.mxu0
    %v1749 = vrot.slane %v1741, 7
    %v1750 = vrot.slane %v1743, 7
    %v1751 = vrot.slane %v1746, 7
    %v1752 = vsel %vm129, %v1750, %v1751
    %v1753 = vsel %vm129, %v1749, %v1750
    %v1754 = vsel %vm129, %v1751, %v1749
    %v1755 = vmul.f32 %v1754, %v617
    %v1756 = vmul.f32 %v1753, %v621
    %v1757 = vmul.f32 %v1752, %v625
    %v1758 = vrot.slane %v1741, 1
    %v1759 = vrot.slane %v1743, 1
    %v1760 = vrot.slane %v1746, 1
    %v1761 = vsel %vm139, %v1759, %v1760
    %v1762 = vsel %vm139, %v1758, %v1759
    %v1763 = vsel %vm139, %v1760, %v1758
    %v1764 = vmul.f32 %v1762, %v638
    %v1765 = vmul.f32 %v1761, %v642
    %v1766 = vmul.f32 %v1763, %v646
    %v1767 = vmul.f32 %v1755, %v114
    %v1768 = vmul.f32 %v1756, %v114
    %v1769 = vmul.f32 %v1757, %v114
    %v1770 = vmul.f32 %v1741, %v117
    %v1771 = vmul.f32 %v1743, %v117
    %v1772 = vmul.f32 %v1746, %v117
    %v1773 = vadd.f32 %v1767, %v1770
    %v1774 = vadd.f32 %v1768, %v1771
    %v1775 = vadd.f32 %v1769, %v1772
    %v1776 = vmul.f32 %v1764, %v120
    %v1777 = vmul.f32 %v1765, %v120
    %v1778 = vmul.f32 %v1766, %v120
    %v1779 = vadd.f32 %v1773, %v1776
    %v1780 = vadd.f32 %v1774, %v1777
    %v1781 = vadd.f32 %v1775, %v1778
    %v1782 = vsel %vm666, %v1779, 0.0
    %1783 = vadd.xlane.f32.xlu0 %v1782
    %v1784 = vpop.xlane.xlu0 %1783
    %v1785 = vsel %vm666, %v1780, 0.0
    %1786 = vadd.xlane.f32.xlu0 %v1785
    %v1787 = vpop.xlane.xlu0 %1786
    %v1788 = vsel %vm666, %v1781, 0.0
    %1789 = vadd.xlane.f32.xlu0 %v1788
    %v1790 = vpop.xlane.xlu0 %1789
    %v1791 = vadd.f32 %v1784, %v677
    %v1792 = vadd.f32 %v1787, %v677
    %v1793 = vadd.f32 %v1790, %v677
    %v1794 = vmax.f32 %v1791, 0.0
    %v1795 = vmax.f32 %v1792, 0.0
    %v1796 = vmax.f32 %v1793, 0.0
    %v1797 = vadd.f32 %v1519, %v1794
    %v1798 = vadd.f32 %v1520, %v1795
    %v1799 = vadd.f32 %v1521, %v1796
    %v1800 = vld [vmem:[%s4] sm:$0x3]
    %1802 = vset.pattern.permute.xlu0 0
    %1803 = vperm.xlu0 %1802, %v1797
    %v1804 = vpop.permute.xlu0 %1803
    %1807 = vset.pattern.permute.xlu0 0
    %1808 = vperm.xlu0 %1807, %v1798
    %v1809 = vpop.permute.xlu0 %1808
    %1812 = vset.pattern.permute.xlu0 0
    %1813 = vperm.xlu0 %1812, %v1799
    %v1814 = vpop.permute.xlu0 %1813
    %v1816 = vmul.f32 %v1804, %v40
    %v1817 = vmul.f32 %v1809, %v41
    %v1818 = vmul.f32 %v1814, %v42
    %1822 = vrot.lane.b32.xlu0 %v1816, 126
    %v1823 = vpop.permute.xlu0 %1822
    %1824 = vrot.lane.b32.xlu0 %v1817, 126
    %v1825 = vpop.permute.xlu0 %1824
    %1826 = vrot.lane.b32.xlu0 %v1818, 126
    %v1827 = vpop.permute.xlu0 %1826
    %1831 = vrot.lane.b32.xlu0 %v677, 127
    %v1832 = vpop.permute.xlu0 %1831
    %vm1834 = vcmask 195584
    %v1836 = vsel %vm1834, %v1800, 0
    %1838 = vmatpush.msra.mxu0 0.0
    %1839 = vmatpush.msra.mxu0 0.0
    %1840 = vmatpush.msra.mxu0 0.0
    %1841 = vmatpush.msra.mxu0 0.0
    %1842 = vmatpush.msra.mxu0 0.0
    %1843 = vmatpush.msra.mxu0 0.0
    %1844 = vmatpush.msra.mxu0 0.0
    %1845 = vmatpush.msra.mxu0 0.0
    %1846 = vmatpush.msra.mxu0 0.0
    %1847 = vmatpush.msra.mxu0 0.0
    %1848 = vmatpush.msra.mxu0 0.0
    %1849 = vmatpush.msra.mxu0 0.0
    %1850 = vmatpush.msra.mxu0 0.0
    %1851 = vmatpush.msra.mxu0 %v1827
    %1852 = vmatpush.msra.mxu0 %v1825
    %1853 = vmatpush.msra.mxu0 %v1823
    %1854 = vmatmul.f32.gmra.mxu0 %v1836
    %v1855 = vpop.f32.mrf.mxu0
    %v1856 = vadd.f32 %v1832, %v1855
    %1857 = vdwg.mxu0
    %vm1858 = vcmask 9216
    %v1859 = vsel %vm1858, %v1856, -inf
    %1860 = vmax.xlane.f32.xlu0 %v1859
    %v1861 = vpop.xlane.xlu0 %1860
    %v1862 = vsub.f32 %v1856, %v1861
    %v1863 = vmul.f32 %v1862, 1.442695
    %v1864 = vpow.pop %v1863
    %v1865 = vsel %vm1858, %v1864, 0.0
    %1866 = vadd.xlane.f32.xlu0 %v1865
    %v1867 = vpop.xlane.xlu0 %1866
    %v1868 = vrcp.pop %v1867
    %v1869 = vmul.f32 %v1864, %v1868
    %1870 = vst.msk [vmem:[#allocation5] sm:$0x3] %vm1858, %v1869
    // Predicated region
    $region30: #{forward.1} parent=1 // pred_check
      _
    $region31: #{forward.1} parent=1 // pred_check_branch
      %1872 = sbr.rel (0) target = $region33
    $region32: #{forward.1} parent=1 // pred_region
      %1874 = vsyncadd [#allocation4], 0
      %s1876 = sshll.u32 [#allocation5], 4
      %s1877 = int_to_ptr.vmem [resolvable:$true] %s1876
      %s1878 = sshll.u32 %s6, 4
      %s1879 = int_to_ptr.hbm [resolvable:$true] %s1878
      %1881 = dma.vmem_to_hbm [thread:$0]  %s1877, 32, %s1879, [#allocation4]
    $region33: #{forward.1} parent=1 // pred_fallthru
      _
    // Predicated region
    $region34: #{forward.1} parent=1 // pred_check
      _
    $region35: #{forward.1} parent=1 // pred_check_branch
      %1883 = sbr.rel (0) target = $region37
    $region36: #{forward.1} parent=1 // pred_region
      %1885 = dma.done [#allocation4], 32
    $region37: #{forward.1} parent=1 // pred_fallthru
      _
    %1886 = vsyncpa [#allocation3], 1
    %1887 = vsyncpa [#allocation4], 1

</llo_original>
